<compile_context>
chip_gen: v7x
topology: tpu7x:2x2x1
jax: 0.10.0
libtpu: 0.0.40
codegen_flags: <defaults>
</compile_context>

<pallas_src>
import numpy as np
import jax
import jax.numpy as jnp
from jax.experimental import pallas as pl
from jax.experimental.pallas import tpu as pltpu  # noqa: F401  (see TODOs above)

CUT_SIZE = 8
CUTN = 16
CUT_POW = 0.5   # matches the module-level `cut_pow` global in main.py


def _pool_mask(size, out_size, offset, side):
    """0/1 mask M (out_size, side) and window lengths (out_size,): row i covers
    the adaptive-pool window [floor(i*size/out), ceil((i+1)*size/out)) of the
    crop starting at `offset` inside the full side of length `side`."""
    M = np.zeros((out_size, side), dtype=np.float32)
    lens = np.zeros((out_size,), dtype=np.float32)
    for i in range(out_size):
        start = (i * size) // out_size
        end = -(-((i + 1) * size) // out_size)   # ceil
        M[i, offset + start: offset + end] = 1.0
        lens[i] = end - start
    return M, lens


def cutout_kernel(x_ref, ly_ref, bdx_ref, scale_ref, o_ref):
    # x_ref    : (H, bc*W)        f32   image, lane-dense ((b,c) major, w minor)
    # ly_ref   : (cutn*S, H)      bf16  0/1 row-pool masks, all cutouts fused in M
    # bdx_ref  : (cutn, bc*W, P)  bf16  block-diag kron(I_bc, Mx[n]^T), zero-padded to P lanes
    # scale_ref: (bc*S, cutn*S)   f32   1/(leny*lenx) normalization
    # o_ref    : (bc*S, cutn*S)         lane-dense output: rows (b,c,t), cols (n,s)
    cutn = bdx_ref.shape[0]
    S = ly_ref.shape[0] // cutn
    bcS = o_ref.shape[0]

    # Stage 1: pool over H for ALL cutouts at once (M=cutn*S=128, K=H, N=bc*W=128).
    # Masks are exact 0/1 in bf16; upcast keeps the MXU on the f32 path so the
    # result matches the f32 reference.
    tmp = jnp.dot(ly_ref[...].astype(jnp.float32), x_ref[...],
                  preferred_element_type=jnp.float32)            # (cutn*S, bc*W)

    # Stage 2: pool over W, per cutout.  tmp[n*S:(n+1)*S] is one (8,128) f32
    # tile (free sublane-slice view); K stays dense at bc*W=128 and N is padded
    # to a full lane width so every downstream op works on whole (8,128) vregs.
    blocks = []
    for n in range(cutn):                                        # unrolled at trace time
        tmp_n = tmp[n * S:(n + 1) * S, :]                        # (S, bc*W)
        bd_n = bdx_ref[n].astype(jnp.float32)                    # (bc*W, P)
        blocks.append(jnp.dot(tmp_n, bd_n, preferred_element_type=jnp.float32))
    out_cols = jnp.concatenate(blocks, axis=0)                   # (cutn*S, P) = (128, 128)

    # Lane-dense output: one square (128,128) transpose (XLU; otherwise idle),
    # drop the zero-pad rows (free sublane slice), exact f32 1/len scaling on VPU.
    out_t = out_cols.T[:bcS, :]                                  # (bc*S, cutn*S)
    o_ref[...] = (out_t * scale_ref[...]).astype(o_ref.dtype)


def make_cutouts_pallas(x, ly_mask, bdx_mask, scale, cut_size, cutn):
    B, C, H, W = x.shape
    S = cut_size
    bc = B * C
    P = bdx_mask.shape[-1]

    # Lane-dense image layout (H, bc*W); cols ordered (b*C + c) major, w minor.
    # TODO(synk): at realistic image sizes hoist/cache this transpose instead of
    # paying 2x HBM traffic per call (negligible at 16x16).
    x2 = jnp.transpose(x, (2, 0, 1, 3)).reshape(H, bc * W)

    out = pl.pallas_call(
        cutout_kernel,
        out_shape=jax.ShapeDtypeStruct((bc * S, cutn * S), x.dtype),
        grid=(1,),                      # single step: all 16 cutouts in one shot
        in_specs=[
            pl.BlockSpec((H, bc * W), lambda g: (0, 0)),
            pl.BlockSpec((cutn * S, H), lambda g: (0, 0)),
            pl.BlockSpec((cutn, bc * W, P), lambda g: (0, 0, 0)),
            pl.BlockSpec((bc * S, cutn * S), lambda g: (0, 0)),
        ],
        out_specs=pl.BlockSpec((bc * S, cutn * S), lambda g: (0, 0)),
        # TODO(synk): on v7x at realistic sizes add
        #   compiler_params=pltpu.CompilerParams(vmem_limit_bytes=...)
        # and pipeline_mode=pl.Buffered(1) on the resident image block.
    )(x2, ly_mask, bdx_mask, scale)

    # Slab rows are (b, c, t), cols are (n, s) -> torch layout (cutn*B, C, S, S).
    out = out.reshape(B, C, S, cutn, S)            # (b, c, t, n, s)
    out = jnp.transpose(out, (3, 0, 1, 4, 2))      # (n, b, c, s, t)
    return out.reshape(cutn * B, C, S, S)


def build_cutout_tables(params, cut_size, sideY, sideX, B, C):
    """Host-side: per-cutout 0/1 pool masks (bf16), block-diag kron(I_bc, Mx^T)
    (bf16, zero-padded to a 128-lane multiple) and the f32 1/(leny*lenx) slab."""
    S = cut_size
    bc = B * C
    N = len(params)
    P = bc * S + ((-(bc * S)) % 128)               # pad stage-2 N to full lane width
    eye_bc = np.eye(bc, dtype=np.float32)

    ly_list, bdx_list, leny_list, lenx_list = [], [], [], []
    for (size, oy, ox) in params:
        My, leny = _pool_mask(size, S, oy, sideY)          # (S, H), (S,)
        Mx, lenx = _pool_mask(size, S, ox, sideX)          # (S, W), (S,)
        ly_list.append(My)
        bd = np.zeros((bc * sideX, P), dtype=np.float32)
        bd[:, :bc * S] = np.kron(eye_bc, Mx.T)             # (bc*W, bc*S) block-diag
        bdx_list.append(bd)
        leny_list.append(leny)
        lenx_list.append(lenx)

    ly_mask = jnp.asarray(np.concatenate(ly_list, axis=0), dtype=jnp.bfloat16)   # (N*S, H)
    bdx_mask = jnp.asarray(np.stack(bdx_list, axis=0), dtype=jnp.bfloat16)       # (N, bc*W, P)

    leny_all = np.stack(leny_list, axis=0)                 # (N, S)  y-window lengths
    lenx_all = np.stack(lenx_list, axis=0)                 # (N, S)  x-window lengths
    inv = 1.0 / (leny_all[:, :, None] * lenx_all[:, None, :])        # (n, s, t)
    # scale[(b*C+c)*S + t, n*S + s] = 1 / (leny[n, s] * lenx[n, t])
    scale = np.broadcast_to(inv.transpose(2, 0, 1)[None], (bc, S, N, S))
    scale = jnp.asarray(np.ascontiguousarray(scale).reshape(bc * S, N * S),
                        dtype=jnp.float32)
    return ly_mask, bdx_mask, scale


def _reference(x_np, params, cut_size):
    """Pure numpy crop + adaptive_avg_pool2d reference (PyTorch semantics)."""
    B, C, H, W = x_np.shape
    outs = []
    for (size, oy, ox) in params:
        crop = x_np[:, :, oy:oy + size, ox:ox + size]
        pooled = np.zeros((B, C, cut_size, cut_size), np.float32)
        for i in range(cut_size):
            ys = (i * size) // cut_size
            ye = -(-((i + 1) * size) // cut_size)
            for j in range(cut_size):
                xs = (j * size) // cut_size
                xe = -(-((j + 1) * size) // cut_size)
                pooled[:, :, i, j] = crop[:, :, ys:ye, xs:xe].mean(axis=(2, 3))
        outs.append(pooled)
    return np.concatenate(outs, axis=0)


if __name__ == "__main__":
    B, C, H, W = 2, 4, 16, 16
    key = jax.random.PRNGKey(0)
    kx, kr, ko = jax.random.split(key, 3)
    x = jax.random.normal(kx, (B, C, H, W), dtype=jnp.float32)

    sideY, sideX = H, W
    max_size = min(sideX, sideY)
    min_size = min(sideX, sideY, CUT_SIZE)

    # Per-cutout (size, offsety, offsetx) mirroring the torch rand / randint calls
    # in forward().  Generated in one batch (single device sync) - host-side glue.
    rnd = np.asarray(jax.random.uniform(kr, (CUTN,)))
    off = np.asarray(jax.random.uniform(ko, (CUTN, 2)))
    params = []
    for n in range(CUTN):
        size = int(rnd[n] ** CUT_POW * (max_size - min_size) + min_size)
        offsety = int(off[n, 0] * (sideY - size + 1))
        offsetx = int(off[n, 1] * (sideX - size + 1))
        params.append((size, offsety, offsetx))

    ly_mask, bdx_mask, scale = build_cutout_tables(params, CUT_SIZE, sideY, sideX, B, C)

    out = make_cutouts_pallas(x, ly_mask, bdx_mask, scale, CUT_SIZE, CUTN)
    out = jax.block_until_ready(out)

    ref = _reference(np.asarray(x), params, CUT_SIZE)
    assert out.shape == (CUTN * B, C, CUT_SIZE, CUT_SIZE)
    np.testing.assert_allclose(np.asarray(out), ref, rtol=1e-5, atol=1e-5)

    print("KERNEL_OK")
</pallas_src>

<mosaic_0001>
module attributes {stable_mosaic.version = 11 : i64} {
  func.func @cutout_kernel(%arg0: i32, %arg1: memref<16x128xf32, #tpu.memory_space<vmem>>, %arg2: memref<128x16xbf16, #tpu.memory_space<vmem>>, %arg3: memref<16x128x128xbf16, #tpu.memory_space<vmem>>, %arg4: memref<64x128xf32, #tpu.memory_space<vmem>>, %arg5: memref<64x128xf32, #tpu.memory_space<vmem>>) attributes {dimension_semantics = [#tpu.dimension_semantics<arbitrary>], iteration_bounds = array<i64: 1>, scalar_prefetch = 0 : i64, scratch_operands = 0 : i64, tpu.core_type = #tpu.core_type<tc>, window_params = [{pipeline_mode = #tpu.pipeline_mode<synchronous>, transform_indices = @transform_0, window_bounds = array<i64: 16, 128>}, {pipeline_mode = #tpu.pipeline_mode<synchronous>, transform_indices = @transform_1, window_bounds = array<i64: 128, 16>}, {pipeline_mode = #tpu.pipeline_mode<synchronous>, transform_indices = @transform_2, window_bounds = array<i64: 16, 128, 128>}, {pipeline_mode = #tpu.pipeline_mode<synchronous>, transform_indices = @transform_3, window_bounds = array<i64: 64, 128>}, {pipeline_mode = #tpu.pipeline_mode<synchronous>, transform_indices = @transform_4, window_bounds = array<i64: 64, 128>}]} {
    %c0 = arith.constant 0 : index
    %c0_0 = arith.constant 0 : index
    %0 = vector.load %arg2[%c0, %c0_0] : memref<128x16xbf16, #tpu.memory_space<vmem>>, vector<128x16xbf16>
    %1 = arith.extf %0 : vector<128x16xbf16> to vector<128x16xf32>
    %c0_1 = arith.constant 0 : index
    %c0_2 = arith.constant 0 : index
    %2 = vector.load %arg1[%c0_1, %c0_2] : memref<16x128xf32, #tpu.memory_space<vmem>>, vector<16x128xf32>
    %cst = arith.constant dense<0.000000e+00> : vector<128x128xf32>
    %3 = tpu.matmul %1, %2, %cst {dimension_numbers = #tpu.dot_dimension_numbers<[1], [0], [0], [1], [0, 0, 1, 1], [], []>} : vector<128x16xf32>, vector<16x128xf32>, vector<128x128xf32> -> vector<128x128xf32>
    %4 = vector.extract_strided_slice %3 {offsets = [0, 0], sizes = [8, 128], strides = [1, 1]} : vector<128x128xf32> to vector<8x128xf32>
    %c0_3 = arith.constant 0 : index
    %c0_4 = arith.constant 0 : index
    %c0_5 = arith.constant 0 : index
    %5 = vector.load %arg3[%c0_3, %c0_4, %c0_5] : memref<16x128x128xbf16, #tpu.memory_space<vmem>>, vector<1x128x128xbf16>
    %6 = vector.shape_cast %5 : vector<1x128x128xbf16> to vector<128x128xbf16>
    %7 = arith.extf %6 : vector<128x128xbf16> to vector<128x128xf32>
    %cst_6 = arith.constant dense<0.000000e+00> : vector<8x128xf32>
    %8 = tpu.matmul %4, %7, %cst_6 {dimension_numbers = #tpu.dot_dimension_numbers<[1], [0], [0], [1], [0, 0, 1, 1], [], []>} : vector<8x128xf32>, vector<128x128xf32>, vector<8x128xf32> -> vector<8x128xf32>
    %9 = vector.extract_strided_slice %3 {offsets = [8, 0], sizes = [8, 128], strides = [1, 1]} : vector<128x128xf32> to vector<8x128xf32>
    %c1 = arith.constant 1 : index
    %c0_7 = arith.constant 0 : index
    %c0_8 = arith.constant 0 : index
    %10 = vector.load %arg3[%c1, %c0_7, %c0_8] : memref<16x128x128xbf16, #tpu.memory_space<vmem>>, vector<1x128x128xbf16>
    %11 = vector.shape_cast %10 : vector<1x128x128xbf16> to vector<128x128xbf16>
    %12 = arith.extf %11 : vector<128x128xbf16> to vector<128x128xf32>
    %cst_9 = arith.constant dense<0.000000e+00> : vector<8x128xf32>
    %13 = tpu.matmul %9, %12, %cst_9 {dimension_numbers = #tpu.dot_dimension_numbers<[1], [0], [0], [1], [0, 0, 1, 1], [], []>} : vector<8x128xf32>, vector<128x128xf32>, vector<8x128xf32> -> vector<8x128xf32>
    %14 = vector.extract_strided_slice %3 {offsets = [16, 0], sizes = [8, 128], strides = [1, 1]} : vector<128x128xf32> to vector<8x128xf32>
    %c2 = arith.constant 2 : index
    %c0_10 = arith.constant 0 : index
    %c0_11 = arith.constant 0 : index
    %15 = vector.load %arg3[%c2, %c0_10, %c0_11] : memref<16x128x128xbf16, #tpu.memory_space<vmem>>, vector<1x128x128xbf16>
    %16 = vector.shape_cast %15 : vector<1x128x128xbf16> to vector<128x128xbf16>
    %17 = arith.extf %16 : vector<128x128xbf16> to vector<128x128xf32>
    %cst_12 = arith.constant dense<0.000000e+00> : vector<8x128xf32>
    %18 = tpu.matmul %14, %17, %cst_12 {dimension_numbers = #tpu.dot_dimension_numbers<[1], [0], [0], [1], [0, 0, 1, 1], [], []>} : vector<8x128xf32>, vector<128x128xf32>, vector<8x128xf32> -> vector<8x128xf32>
    %19 = vector.extract_strided_slice %3 {offsets = [24, 0], sizes = [8, 128], strides = [1, 1]} : vector<128x128xf32> to vector<8x128xf32>
    %c3 = arith.constant 3 : index
    %c0_13 = arith.constant 0 : index
    %c0_14 = arith.constant 0 : index
    %20 = vector.load %arg3[%c3, %c0_13, %c0_14] : memref<16x128x128xbf16, #tpu.memory_space<vmem>>, vector<1x128x128xbf16>
    %21 = vector.shape_cast %20 : vector<1x128x128xbf16> to vector<128x128xbf16>
    %22 = arith.extf %21 : vector<128x128xbf16> to vector<128x128xf32>
    %cst_15 = arith.constant dense<0.000000e+00> : vector<8x128xf32>
    %23 = tpu.matmul %19, %22, %cst_15 {dimension_numbers = #tpu.dot_dimension_numbers<[1], [0], [0], [1], [0, 0, 1, 1], [], []>} : vector<8x128xf32>, vector<128x128xf32>, vector<8x128xf32> -> vector<8x128xf32>
    %24 = vector.extract_strided_slice %3 {offsets = [32, 0], sizes = [8, 128], strides = [1, 1]} : vector<128x128xf32> to vector<8x128xf32>
    %c4 = arith.constant 4 : index
    %c0_16 = arith.constant 0 : index
    %c0_17 = arith.constant 0 : index
    %25 = vector.load %arg3[%c4, %c0_16, %c0_17] : memref<16x128x128xbf16, #tpu.memory_space<vmem>>, vector<1x128x128xbf16>
    %26 = vector.shape_cast %25 : vector<1x128x128xbf16> to vector<128x128xbf16>
    %27 = arith.extf %26 : vector<128x128xbf16> to vector<128x128xf32>
    %cst_18 = arith.constant dense<0.000000e+00> : vector<8x128xf32>
    %28 = tpu.matmul %24, %27, %cst_18 {dimension_numbers = #tpu.dot_dimension_numbers<[1], [0], [0], [1], [0, 0, 1, 1], [], []>} : vector<8x128xf32>, vector<128x128xf32>, vector<8x128xf32> -> vector<8x128xf32>
    %29 = vector.extract_strided_slice %3 {offsets = [40, 0], sizes = [8, 128], strides = [1, 1]} : vector<128x128xf32> to vector<8x128xf32>
    %c5 = arith.constant 5 : index
    %c0_19 = arith.constant 0 : index
    %c0_20 = arith.constant 0 : index
    %30 = vector.load %arg3[%c5, %c0_19, %c0_20] : memref<16x128x128xbf16, #tpu.memory_space<vmem>>, vector<1x128x128xbf16>
    %31 = vector.shape_cast %30 : vector<1x128x128xbf16> to vector<128x128xbf16>
    %32 = arith.extf %31 : vector<128x128xbf16> to vector<128x128xf32>
    %cst_21 = arith.constant dense<0.000000e+00> : vector<8x128xf32>
    %33 = tpu.matmul %29, %32, %cst_21 {dimension_numbers = #tpu.dot_dimension_numbers<[1], [0], [0], [1], [0, 0, 1, 1], [], []>} : vector<8x128xf32>, vector<128x128xf32>, vector<8x128xf32> -> vector<8x128xf32>
    %34 = vector.extract_strided_slice %3 {offsets = [48, 0], sizes = [8, 128], strides = [1, 1]} : vector<128x128xf32> to vector<8x128xf32>
    %c6 = arith.constant 6 : index
    %c0_22 = arith.constant 0 : index
    %c0_23 = arith.constant 0 : index
    %35 = vector.load %arg3[%c6, %c0_22, %c0_23] : memref<16x128x128xbf16, #tpu.memory_space<vmem>>, vector<1x128x128xbf16>
    %36 = vector.shape_cast %35 : vector<1x128x128xbf16> to vector<128x128xbf16>
    %37 = arith.extf %36 : vector<128x128xbf16> to vector<128x128xf32>
    %cst_24 = arith.constant dense<0.000000e+00> : vector<8x128xf32>
    %38 = tpu.matmul %34, %37, %cst_24 {dimension_numbers = #tpu.dot_dimension_numbers<[1], [0], [0], [1], [0, 0, 1, 1], [], []>} : vector<8x128xf32>, vector<128x128xf32>, vector<8x128xf32> -> vector<8x128xf32>
    %39 = vector.extract_strided_slice %3 {offsets = [56, 0], sizes = [8, 128], strides = [1, 1]} : vector<128x128xf32> to vector<8x128xf32>
    %c7 = arith.constant 7 : index
    %c0_25 = arith.constant 0 : index
    %c0_26 = arith.constant 0 : index
    %40 = vector.load %arg3[%c7, %c0_25, %c0_26] : memref<16x128x128xbf16, #tpu.memory_space<vmem>>, vector<1x128x128xbf16>
    %41 = vector.shape_cast %40 : vector<1x128x128xbf16> to vector<128x128xbf16>
    %42 = arith.extf %41 : vector<128x128xbf16> to vector<128x128xf32>
    %cst_27 = arith.constant dense<0.000000e+00> : vector<8x128xf32>
    %43 = tpu.matmul %39, %42, %cst_27 {dimension_numbers = #tpu.dot_dimension_numbers<[1], [0], [0], [1], [0, 0, 1, 1], [], []>} : vector<8x128xf32>, vector<128x128xf32>, vector<8x128xf32> -> vector<8x128xf32>
    %44 = vector.extract_strided_slice %3 {offsets = [64, 0], sizes = [8, 128], strides = [1, 1]} : vector<128x128xf32> to vector<8x128xf32>
    %c8 = arith.constant 8 : index
    %c0_28 = arith.constant 0 : index
    %c0_29 = arith.constant 0 : index
    %45 = vector.load %arg3[%c8, %c0_28, %c0_29] : memref<16x128x128xbf16, #tpu.memory_space<vmem>>, vector<1x128x128xbf16>
    %46 = vector.shape_cast %45 : vector<1x128x128xbf16> to vector<128x128xbf16>
    %47 = arith.extf %46 : vector<128x128xbf16> to vector<128x128xf32>
    %cst_30 = arith.constant dense<0.000000e+00> : vector<8x128xf32>
    %48 = tpu.matmul %44, %47, %cst_30 {dimension_numbers = #tpu.dot_dimension_numbers<[1], [0], [0], [1], [0, 0, 1, 1], [], []>} : vector<8x128xf32>, vector<128x128xf32>, vector<8x128xf32> -> vector<8x128xf32>
    %49 = vector.extract_strided_slice %3 {offsets = [72, 0], sizes = [8, 128], strides = [1, 1]} : vector<128x128xf32> to vector<8x128xf32>
    %c9 = arith.constant 9 : index
    %c0_31 = arith.constant 0 : index
    %c0_32 = arith.constant 0 : index
    %50 = vector.load %arg3[%c9, %c0_31, %c0_32] : memref<16x128x128xbf16, #tpu.memory_space<vmem>>, vector<1x128x128xbf16>
    %51 = vector.shape_cast %50 : vector<1x128x128xbf16> to vector<128x128xbf16>
    %52 = arith.extf %51 : vector<128x128xbf16> to vector<128x128xf32>
    %cst_33 = arith.constant dense<0.000000e+00> : vector<8x128xf32>
    %53 = tpu.matmul %49, %52, %cst_33 {dimension_numbers = #tpu.dot_dimension_numbers<[1], [0], [0], [1], [0, 0, 1, 1], [], []>} : vector<8x128xf32>, vector<128x128xf32>, vector<8x128xf32> -> vector<8x128xf32>
    %54 = vector.extract_strided_slice %3 {offsets = [80, 0], sizes = [8, 128], strides = [1, 1]} : vector<128x128xf32> to vector<8x128xf32>
    %c10 = arith.constant 10 : index
    %c0_34 = arith.constant 0 : index
    %c0_35 = arith.constant 0 : index
    %55 = vector.load %arg3[%c10, %c0_34, %c0_35] : memref<16x128x128xbf16, #tpu.memory_space<vmem>>, vector<1x128x128xbf16>
    %56 = vector.shape_cast %55 : vector<1x128x128xbf16> to vector<128x128xbf16>
    %57 = arith.extf %56 : vector<128x128xbf16> to vector<128x128xf32>
    %cst_36 = arith.constant dense<0.000000e+00> : vector<8x128xf32>
    %58 = tpu.matmul %54, %57, %cst_36 {dimension_numbers = #tpu.dot_dimension_numbers<[1], [0], [0], [1], [0, 0, 1, 1], [], []>} : vector<8x128xf32>, vector<128x128xf32>, vector<8x128xf32> -> vector<8x128xf32>
    %59 = vector.extract_strided_slice %3 {offsets = [88, 0], sizes = [8, 128], strides = [1, 1]} : vector<128x128xf32> to vector<8x128xf32>
    %c11 = arith.constant 11 : index
    %c0_37 = arith.constant 0 : index
    %c0_38 = arith.constant 0 : index
    %60 = vector.load %arg3[%c11, %c0_37, %c0_38] : memref<16x128x128xbf16, #tpu.memory_space<vmem>>, vector<1x128x128xbf16>
    %61 = vector.shape_cast %60 : vector<1x128x128xbf16> to vector<128x128xbf16>
    %62 = arith.extf %61 : vector<128x128xbf16> to vector<128x128xf32>
    %cst_39 = arith.constant dense<0.000000e+00> : vector<8x128xf32>
    %63 = tpu.matmul %59, %62, %cst_39 {dimension_numbers = #tpu.dot_dimension_numbers<[1], [0], [0], [1], [0, 0, 1, 1], [], []>} : vector<8x128xf32>, vector<128x128xf32>, vector<8x128xf32> -> vector<8x128xf32>
    %64 = vector.extract_strided_slice %3 {offsets = [96, 0], sizes = [8, 128], strides = [1, 1]} : vector<128x128xf32> to vector<8x128xf32>
    %c12 = arith.constant 12 : index
    %c0_40 = arith.constant 0 : index
    %c0_41 = arith.constant 0 : index
    %65 = vector.load %arg3[%c12, %c0_40, %c0_41] : memref<16x128x128xbf16, #tpu.memory_space<vmem>>, vector<1x128x128xbf16>
    %66 = vector.shape_cast %65 : vector<1x128x128xbf16> to vector<128x128xbf16>
    %67 = arith.extf %66 : vector<128x128xbf16> to vector<128x128xf32>
    %cst_42 = arith.constant dense<0.000000e+00> : vector<8x128xf32>
    %68 = tpu.matmul %64, %67, %cst_42 {dimension_numbers = #tpu.dot_dimension_numbers<[1], [0], [0], [1], [0, 0, 1, 1], [], []>} : vector<8x128xf32>, vector<128x128xf32>, vector<8x128xf32> -> vector<8x128xf32>
    %69 = vector.extract_strided_slice %3 {offsets = [104, 0], sizes = [8, 128], strides = [1, 1]} : vector<128x128xf32> to vector<8x128xf32>
    %c13 = arith.constant 13 : index
    %c0_43 = arith.constant 0 : index
    %c0_44 = arith.constant 0 : index
    %70 = vector.load %arg3[%c13, %c0_43, %c0_44] : memref<16x128x128xbf16, #tpu.memory_space<vmem>>, vector<1x128x128xbf16>
    %71 = vector.shape_cast %70 : vector<1x128x128xbf16> to vector<128x128xbf16>
    %72 = arith.extf %71 : vector<128x128xbf16> to vector<128x128xf32>
    %cst_45 = arith.constant dense<0.000000e+00> : vector<8x128xf32>
    %73 = tpu.matmul %69, %72, %cst_45 {dimension_numbers = #tpu.dot_dimension_numbers<[1], [0], [0], [1], [0, 0, 1, 1], [], []>} : vector<8x128xf32>, vector<128x128xf32>, vector<8x128xf32> -> vector<8x128xf32>
    %74 = vector.extract_strided_slice %3 {offsets = [112, 0], sizes = [8, 128], strides = [1, 1]} : vector<128x128xf32> to vector<8x128xf32>
    %c14 = arith.constant 14 : index
    %c0_46 = arith.constant 0 : index
    %c0_47 = arith.constant 0 : index
    %75 = vector.load %arg3[%c14, %c0_46, %c0_47] : memref<16x128x128xbf16, #tpu.memory_space<vmem>>, vector<1x128x128xbf16>
    %76 = vector.shape_cast %75 : vector<1x128x128xbf16> to vector<128x128xbf16>
    %77 = arith.extf %76 : vector<128x128xbf16> to vector<128x128xf32>
    %cst_48 = arith.constant dense<0.000000e+00> : vector<8x128xf32>
    %78 = tpu.matmul %74, %77, %cst_48 {dimension_numbers = #tpu.dot_dimension_numbers<[1], [0], [0], [1], [0, 0, 1, 1], [], []>} : vector<8x128xf32>, vector<128x128xf32>, vector<8x128xf32> -> vector<8x128xf32>
    %79 = vector.extract_strided_slice %3 {offsets = [120, 0], sizes = [8, 128], strides = [1, 1]} : vector<128x128xf32> to vector<8x128xf32>
    %c15 = arith.constant 15 : index
    %c0_49 = arith.constant 0 : index
    %c0_50 = arith.constant 0 : index
    %80 = vector.load %arg3[%c15, %c0_49, %c0_50] : memref<16x128x128xbf16, #tpu.memory_space<vmem>>, vector<1x128x128xbf16>
    %81 = vector.shape_cast %80 : vector<1x128x128xbf16> to vector<128x128xbf16>
    %82 = arith.extf %81 : vector<128x128xbf16> to vector<128x128xf32>
    %cst_51 = arith.constant dense<0.000000e+00> : vector<8x128xf32>
    %83 = tpu.matmul %79, %82, %cst_51 {dimension_numbers = #tpu.dot_dimension_numbers<[1], [0], [0], [1], [0, 0, 1, 1], [], []>} : vector<8x128xf32>, vector<128x128xf32>, vector<8x128xf32> -> vector<8x128xf32>
    %84 = tpu.concatenate %8, %13, %18, %23, %28, %33, %38, %43, %48, %53, %58, %63, %68, %73, %78, %83 in 0 : vector<8x128xf32>, vector<8x128xf32>, vector<8x128xf32>, vector<8x128xf32>, vector<8x128xf32>, vector<8x128xf32>, vector<8x128xf32>, vector<8x128xf32>, vector<8x128xf32>, vector<8x128xf32>, vector<8x128xf32>, vector<8x128xf32>, vector<8x128xf32>, vector<8x128xf32>, vector<8x128xf32>, vector<8x128xf32> -> vector<128x128xf32>
    %85 = tpu.transpose %84, [1, 0] : vector<128x128xf32> -> vector<128x128xf32>
    %86 = vector.extract_strided_slice %85 {offsets = [0, 0], sizes = [64, 128], strides = [1, 1]} : vector<128x128xf32> to vector<64x128xf32>
    %c0_52 = arith.constant 0 : index
    %c0_53 = arith.constant 0 : index
    %87 = vector.load %arg4[%c0_52, %c0_53] : memref<64x128xf32, #tpu.memory_space<vmem>>, vector<64x128xf32>
    %88 = arith.mulf %86, %87 : vector<64x128xf32>
    %c0_54 = arith.constant 0 : index
    %c0_55 = arith.constant 0 : index
    %89 = vector.load %arg5[%c0_54, %c0_55] : memref<64x128xf32, #tpu.memory_space<vmem>>, vector<64x128xf32>
    tpu.vector_store %arg5[%c0_54, %c0_55], %88 {strides = array<i32>} : memref<64x128xf32, #tpu.memory_space<vmem>>, vector<64x128xf32>,
    return
  }
  func.func @transform_0(%arg0: i32) -> (i32, i32) {
    %c0_i32 = arith.constant 0 : i32
    %c0_i32_0 = arith.constant 0 : i32
    %c0_i32_1 = arith.constant 0 : i32
    return %c0_i32, %c0_i32_0 : i32, i32
  }
  func.func @transform_1(%arg0: i32) -> (i32, i32) {
    %c0_i32 = arith.constant 0 : i32
    %c0_i32_0 = arith.constant 0 : i32
    %c0_i32_1 = arith.constant 0 : i32
    return %c0_i32, %c0_i32_0 : i32, i32
  }
  func.func @transform_2(%arg0: i32) -> (i32, i32, i32) {
    %c0_i32 = arith.constant 0 : i32
    %c0_i32_0 = arith.constant 0 : i32
    %c0_i32_1 = arith.constant 0 : i32
    %c0_i32_2 = arith.constant 0 : i32
    return %c0_i32, %c0_i32_0, %c0_i32_1 : i32, i32, i32
  }
  func.func @transform_3(%arg0: i32) -> (i32, i32) {
    %c0_i32 = arith.constant 0 : i32
    %c0_i32_0 = arith.constant 0 : i32
    %c0_i32_1 = arith.constant 0 : i32
    return %c0_i32, %c0_i32_0 : i32, i32
  }
  func.func @transform_4(%arg0: i32) -> (i32, i32) {
    %c0_i32 = arith.constant 0 : i32
    %c0_i32_0 = arith.constant 0 : i32
    %c0_i32_1 = arith.constant 0 : i32
    return %c0_i32, %c0_i32_0 : i32, i32
  }
}

</mosaic_0001>

<llo_original>
// kernel: tpu_custom_call.1
$region0: #{tpu_custom_call.1}
  #allocation0 [shape = 'u32[]', space=smem, size = 0x4, offset = 0x4, fixed_abs, tag = 'smem constant byte address 0x4 - core index']
  #allocation1 [shape = 'u32[144,128]{1,0:T(1,128)}', space=vmem, size = 0x12000, scoped, tag = 'internal scratch']
  %s0 = inlined_call_operand.vmem [shape: f32[16,128], index: 0, kind: input, shape index: {}]
  %s1 = inlined_call_operand.vmem [shape: bf16[128,16], index: 1, kind: input, shape index: {}]
  %s2 = inlined_call_operand.hbm [shape: bf16[16,128,128], index: 2, kind: input, shape index: {}]
  %s3 = inlined_call_operand.vmem [shape: f32[64,128], index: 3, kind: input, shape index: {}]
  %s4 = inlined_call_operand.hbm [shape: f32[64,128], index: 4, kind: output, shape index: {}]
  %s5 = sld [smem:[#allocation0]]
  $region30: #{tpu_custom_call.1} parent=0
    _
  %s7 = ssub.s32 1, %s5
  %s8 = scalar_select 0, %s7, %s5
  $region1: #{tpu_custom_call.1} parent=0
    #allocation2 [shape = 'u8[524288]{0}', space=vmem, size = 0x80000, scoped, tag = 'input window, operand 2, single buffered']
    #allocation3 [shape = 's32[1]{0}', space=sflag, size = 0x4, scoped, tag = 'scoped memory for tpu_custom_call.1']
    #allocation4 [shape = 's32[1]{0}', space=sflag, size = 0x4, scoped, tag = 'scoped memory for tpu_custom_call.1']
    #allocation5 [shape = 'u8[32768]{0}', space=vmem, size = 0x8000, scoped, tag = 'output window, operand 0, single buffered']
    %9 = vsyncpa [#allocation3], 0
    %10 = vsyncpa [#allocation4], 0
    // Predicated region
    $region2: #{tpu_custom_call.1} parent=1 // pred_check
      _
    $region3: #{tpu_custom_call.1} parent=1 // pred_check_branch
      %12 = sbr.rel (0) target = $region5
    $region4: #{tpu_custom_call.1} parent=1 // pred_region
      _
    $region5: #{tpu_custom_call.1} parent=1 // pred_fallthru
      _
    // Predicated region
    $region6: #{tpu_custom_call.1} parent=1 // pred_check
      _
    $region7: #{tpu_custom_call.1} parent=1 // pred_check_branch
      %14 = sbr.rel (0) target = $region9
    $region8: #{tpu_custom_call.1} parent=1 // pred_region
      _
    $region9: #{tpu_custom_call.1} parent=1 // pred_fallthru
      _
    // Predicated region
    $region10: #{tpu_custom_call.1} parent=1 // pred_check
      _
    $region11: #{tpu_custom_call.1} parent=1 // pred_check_branch
      %16 = sbr.rel (0) target = $region13
    $region12: #{tpu_custom_call.1} parent=1 // pred_region
      %s18 = ssub.s32 16384, 16384
      %19 = vsyncadd [#allocation3], %s18
      %s20 = sshll.u32 [#allocation2], 4
      %s21 = int_to_ptr.vmem [resolvable:$true] %s20
      %26 = dma.hbm_to_vmem [thread:$0]  %s2, 16384, %s21, [#allocation3], 64, 64, 4
    $region13: #{tpu_custom_call.1} parent=1 // pred_fallthru
      _
    // Predicated region
    $region14: #{tpu_custom_call.1} parent=1 // pred_check
      _
    $region15: #{tpu_custom_call.1} parent=1 // pred_check_branch
      %28 = sbr.rel (0) target = $region17
    $region16: #{tpu_custom_call.1} parent=1 // pred_region
      _
    $region17: #{tpu_custom_call.1} parent=1 // pred_fallthru
      _
    // Predicated region
    $region18: #{tpu_custom_call.1} parent=1 // pred_check
      _
    $region19: #{tpu_custom_call.1} parent=1 // pred_check_branch
      %30 = sbr.rel (0) target = $region21
    $region20: #{tpu_custom_call.1} parent=1 // pred_region
      %31 = dma.done [#allocation3], 16384
    $region21: #{tpu_custom_call.1} parent=1 // pred_fallthru
      _
    %v32 = vld [vmem:[%s1] sm:$0xf]
    %v33 = vld [vmem:[%s1 + $0x4] sm:$0xf]
    %v34 = vld [vmem:[%s1 + $0x8] sm:$0xf]
    %v35 = vld [vmem:[%s1 + $0xc] sm:$0xf]
    %v36 = vld [vmem:[%s1 + $0x10] sm:$0xf]
    %v37 = vld [vmem:[%s1 + $0x14] sm:$0xf]
    %v38 = vld [vmem:[%s1 + $0x18] sm:$0xf]
    %v39 = vld [vmem:[%s1 + $0x1c] sm:$0xf]
    %v40 = vld [vmem:[%s1 + $0x20] sm:$0xf]
    %v41 = vld [vmem:[%s1 + $0x24] sm:$0xf]
    %v42 = vld [vmem:[%s1 + $0x28] sm:$0xf]
    %v43 = vld [vmem:[%s1 + $0x2c] sm:$0xf]
    %v44 = vld [vmem:[%s1 + $0x30] sm:$0xf]
    %v45 = vld [vmem:[%s1 + $0x34] sm:$0xf]
    %v46 = vld [vmem:[%s1 + $0x38] sm:$0xf]
    %v47 = vld [vmem:[%s1 + $0x3c] sm:$0xf]
    %v48 = vunpack.c.l.bf16 %v32
    %v49 = vunpack.c.l.bf16 %v33
    %v50 = vunpack.c.l.bf16 %v34
    %v51 = vunpack.c.l.bf16 %v35
    %v52 = vunpack.c.l.bf16 %v36
    %v53 = vunpack.c.l.bf16 %v37
    %v54 = vunpack.c.l.bf16 %v38
    %v55 = vunpack.c.l.bf16 %v39
    %v56 = vunpack.c.l.bf16 %v40
    %v57 = vunpack.c.l.bf16 %v41
    %v58 = vunpack.c.l.bf16 %v42
    %v59 = vunpack.c.l.bf16 %v43
    %v60 = vunpack.c.l.bf16 %v44
    %v61 = vunpack.c.l.bf16 %v45
    %v62 = vunpack.c.l.bf16 %v46
    %v63 = vunpack.c.l.bf16 %v47
    %v64 = vld [vmem:[%s0] sm:$0xff]
    %v65 = vld [vmem:[%s0 + $0x8] sm:$0xff]
    %vm66 = vcmask 130048
    %v68 = vsel %vm66, %v48, 0
    %v71 = vsel %vm66, %v49, 0
    %v74 = vsel %vm66, %v50, 0
    %v77 = vsel %vm66, %v51, 0
    %v80 = vsel %vm66, %v52, 0
    %v83 = vsel %vm66, %v53, 0
    %v86 = vsel %vm66, %v54, 0
    %v89 = vsel %vm66, %v55, 0
    %v92 = vsel %vm66, %v56, 0
    %v95 = vsel %vm66, %v57, 0
    %v98 = vsel %vm66, %v58, 0
    %v101 = vsel %vm66, %v59, 0
    %v104 = vsel %vm66, %v60, 0
    %v107 = vsel %vm66, %v61, 0
    %v110 = vsel %vm66, %v62, 0
    %v113 = vsel %vm66, %v63, 0
    %115 = vmatprep.subr.mxu0 0.0
    %116 = vmatpush1.msra.mxu0 %v64
    %117 = vmatprep.subr.mxu0 0.0
    %118 = vmatpush1.msra.mxu0 %v65
    %119 = vmatprep.subr.mxu0 0.0
    %120 = vmatpush1.msra.mxu0 0.0
    %121 = vmatprep.subr.mxu0 0.0
    %122 = vmatpush1.msra.mxu0 0.0
    %123 = vmatprep.subr.mxu0 0.0
    %124 = vmatpush1.msra.mxu0 0.0
    %125 = vmatprep.subr.mxu0 0.0
    %126 = vmatpush1.msra.mxu0 0.0
    %127 = vmatprep.subr.mxu0 0.0
    %128 = vmatpush1.msra.mxu0 0.0
    %129 = vmatprep.subr.mxu0 0.0
    %130 = vmatpush1.msra.mxu0 0.0
    %131 = vmatprep.subr.mxu0 0.0
    %132 = vmatpush1.msra.mxu0 0.0
    %133 = vmatprep.subr.mxu0 0.0
    %134 = vmatpush1.msra.mxu0 0.0
    %135 = vmatprep.subr.mxu0 0.0
    %136 = vmatpush1.msra.mxu0 0.0
    %137 = vmatprep.subr.mxu0 0.0
    %138 = vmatpush1.msra.mxu0 0.0
    %139 = vmatprep.subr.mxu0 0.0
    %140 = vmatpush1.msra.mxu0 0.0
    %141 = vmatprep.subr.mxu0 0.0
    %142 = vmatpush1.msra.mxu0 0.0
    %143 = vmatprep.subr.mxu0 0.0
    %144 = vmatpush1.msra.mxu0 0.0
    %145 = vmatprep.subr.mxu0 0.0
    %146 = vmatpush1.msra.mxu0 0.0
    %147 = vmatprep.subr.mxu0 0.0
    %148 = vmatpush1.msra.mxu0 0.0
    %149 = vmatprep.subr.mxu0 0.0
    %150 = vmatpush1.msra.mxu0 0.0
    %151 = vmatprep.subr.mxu0 0.0
    %152 = vmatpush1.msra.mxu0 0.0
    %153 = vmatprep.subr.mxu0 0.0
    %154 = vmatpush1.msra.mxu0 0.0
    %155 = vmatprep.subr.mxu0 0.0
    %156 = vmatpush1.msra.mxu0 0.0
    %157 = vmatprep.subr.mxu0 0.0
    %158 = vmatpush1.msra.mxu0 0.0
    %159 = vmatprep.subr.mxu0 0.0
    %160 = vmatpush1.msra.mxu0 0.0
    %161 = vmatprep.subr.mxu0 0.0
    %162 = vmatpush1.msra.mxu0 0.0
    %163 = vmatprep.subr.mxu0 0.0
    %164 = vmatpush1.msra.mxu0 0.0
    %165 = vmatprep.subr.mxu0 0.0
    %166 = vmatpush1.msra.mxu0 0.0
    %167 = vmatprep.subr.mxu0 0.0
    %168 = vmatpush1.msra.mxu0 0.0
    %169 = vmatprep.subr.mxu0 0.0
    %170 = vmatpush1.msra.mxu0 0.0
    %171 = vmatprep.subr.mxu0 0.0
    %172 = vmatpush1.msra.mxu0 0.0
    %173 = vmatprep.subr.mxu0 0.0
    %174 = vmatpush1.msra.mxu0 0.0
    %175 = vmatprep.subr.mxu0 0.0
    %176 = vmatpush1.msra.mxu0 0.0
    %177 = vmatprep.subr.mxu0 0.0
    %178 = vmatpush1.msra.mxu0 0.0
    %179 = vmatprep.mubr.f32.mxu0 0.0
    %180 = vmatmul.mubr.f32.gmra.mrb[0].mxu0 %v68
    %v181 = vpop.f32.mrb[0].mxu0
    %v182 = vadd.f32 0.0, %v181
    %v183 = vpop.f32.mrb[0].mxu0
    %184 = vmatprep.mubr.f32.mxu0 0.0
    %185 = vmatmul.mubr.f32.gmra.mrb[0].mxu0 %v71
    %v186 = vpop.f32.mrb[0].mxu0
    %v187 = vadd.f32 0.0, %v186
    %v188 = vpop.f32.mrb[0].mxu0
    %189 = vmatprep.mubr.f32.mxu0 0.0
    %190 = vmatmul.mubr.f32.gmra.mrb[0].mxu0 %v74
    %v191 = vpop.f32.mrb[0].mxu0
    %v192 = vadd.f32 0.0, %v191
    %v193 = vpop.f32.mrb[0].mxu0
    %194 = vmatprep.mubr.f32.mxu0 0.0
    %195 = vmatmul.mubr.f32.gmra.mrb[0].mxu0 %v77
    %v196 = vpop.f32.mrb[0].mxu0
    %v197 = vadd.f32 0.0, %v196
    %v198 = vpop.f32.mrb[0].mxu0
    %199 = vmatprep.mubr.f32.mxu0 0.0
    %200 = vmatmul.mubr.f32.gmra.mrb[0].mxu0 %v80
    %v201 = vpop.f32.mrb[0].mxu0
    %v202 = vadd.f32 0.0, %v201
    %v203 = vpop.f32.mrb[0].mxu0
    %204 = vmatprep.mubr.f32.mxu0 0.0
    %205 = vmatmul.mubr.f32.gmra.mrb[0].mxu0 %v83
    %v206 = vpop.f32.mrb[0].mxu0
    %v207 = vadd.f32 0.0, %v206
    %v208 = vpop.f32.mrb[0].mxu0
    %209 = vmatprep.mubr.f32.mxu0 0.0
    %210 = vmatmul.mubr.f32.gmra.mrb[0].mxu0 %v86
    %v211 = vpop.f32.mrb[0].mxu0
    %v212 = vadd.f32 0.0, %v211
    %v213 = vpop.f32.mrb[0].mxu0
    %214 = vmatprep.mubr.f32.mxu0 0.0
    %215 = vmatmul.mubr.f32.gmra.mrb[0].mxu0 %v89
    %v216 = vpop.f32.mrb[0].mxu0
    %v217 = vadd.f32 0.0, %v216
    %v218 = vpop.f32.mrb[0].mxu0
    %219 = vmatprep.mubr.f32.mxu0 0.0
    %220 = vmatmul.mubr.f32.gmra.mrb[0].mxu0 %v92
    %v221 = vpop.f32.mrb[0].mxu0
    %v222 = vadd.f32 0.0, %v221
    %v223 = vpop.f32.mrb[0].mxu0
    %224 = vmatprep.mubr.f32.mxu0 0.0
    %225 = vmatmul.mubr.f32.gmra.mrb[0].mxu0 %v95
    %v226 = vpop.f32.mrb[0].mxu0
    %v227 = vadd.f32 0.0, %v226
    %v228 = vpop.f32.mrb[0].mxu0
    %229 = vmatprep.mubr.f32.mxu0 0.0
    %230 = vmatmul.mubr.f32.gmra.mrb[0].mxu0 %v98
    %v231 = vpop.f32.mrb[0].mxu0
    %v232 = vadd.f32 0.0, %v231
    %v233 = vpop.f32.mrb[0].mxu0
    %234 = vmatprep.mubr.f32.mxu0 0.0
    %235 = vmatmul.mubr.f32.gmra.mrb[0].mxu0 %v101
    %v236 = vpop.f32.mrb[0].mxu0
    %v237 = vadd.f32 0.0, %v236
    %v238 = vpop.f32.mrb[0].mxu0
    %239 = vmatprep.mubr.f32.mxu0 0.0
    %240 = vmatmul.mubr.f32.gmra.mrb[0].mxu0 %v104
    %v241 = vpop.f32.mrb[0].mxu0
    %v242 = vadd.f32 0.0, %v241
    %v243 = vpop.f32.mrb[0].mxu0
    %244 = vmatprep.mubr.f32.mxu0 0.0
    %245 = vmatmul.mubr.f32.gmra.mrb[0].mxu0 %v107
    %v246 = vpop.f32.mrb[0].mxu0
    %v247 = vadd.f32 0.0, %v246
    %v248 = vpop.f32.mrb[0].mxu0
    %249 = vmatprep.mubr.f32.mxu0 0.0
    %250 = vmatmul.mubr.f32.gmra.mrb[0].mxu0 %v110
    %v251 = vpop.f32.mrb[0].mxu0
    %v252 = vadd.f32 0.0, %v251
    %v253 = vpop.f32.mrb[0].mxu0
    %254 = vmatprep.mubr.f32.mxu0 0.0
    %255 = vmatmul.mubr.f32.gmra.mrb[0].mxu0 %v113
    %v256 = vpop.f32.mrb[0].mxu0
    %v257 = vadd.f32 0.0, %v256
    %v258 = vpop.f32.mrb[0].mxu0
    %259 = vdwg.mxu0
    %v260 = vld [vmem:[#allocation2] sm:$0xf]
    %v261 = vld [vmem:[#allocation2 + $0x4] sm:$0xf]
    %v262 = vld [vmem:[#allocation2 + $0x8] sm:$0xf]
    %v263 = vld [vmem:[#allocation2 + $0xc] sm:$0xf]
    %v264 = vld [vmem:[#allocation2 + $0x10] sm:$0xf]
    %v265 = vld [vmem:[#allocation2 + $0x14] sm:$0xf]
    %v266 = vld [vmem:[#allocation2 + $0x18] sm:$0xf]
    %v267 = vld [vmem:[#allocation2 + $0x1c] sm:$0xf]
    %v268 = vld [vmem:[#allocation2 + $0x20] sm:$0xf]
    %v269 = vld [vmem:[#allocation2 + $0x24] sm:$0xf]
    %v270 = vld [vmem:[#allocation2 + $0x28] sm:$0xf]
    %v271 = vld [vmem:[#allocation2 + $0x2c] sm:$0xf]
    %v272 = vld [vmem:[#allocation2 + $0x30] sm:$0xf]
    %v273 = vld [vmem:[#allocation2 + $0x34] sm:$0xf]
    %v274 = vld [vmem:[#allocation2 + $0x38] sm:$0xf]
    %v275 = vld [vmem:[#allocation2 + $0x3c] sm:$0xf]
    %v276 = vunpack.c.l.bf16 %v260
    %v277 = vunpack.c.l.bf16 %v261
    %v278 = vunpack.c.l.bf16 %v262
    %v279 = vunpack.c.l.bf16 %v263
    %v280 = vunpack.c.l.bf16 %v264
    %v281 = vunpack.c.l.bf16 %v265
    %v282 = vunpack.c.l.bf16 %v266
    %v283 = vunpack.c.l.bf16 %v267
    %v284 = vunpack.c.l.bf16 %v268
    %v285 = vunpack.c.l.bf16 %v269
    %v286 = vunpack.c.l.bf16 %v270
    %v287 = vunpack.c.l.bf16 %v271
    %v288 = vunpack.c.l.bf16 %v272
    %v289 = vunpack.c.l.bf16 %v273
    %v290 = vunpack.c.l.bf16 %v274
    %v291 = vunpack.c.l.bf16 %v275
    %292 = vmatprep.subr.mxu0 0.0
    %293 = vmatpush1.msra.mxu0 %v276
    %294 = vmatprep.subr.mxu0 0.0
    %295 = vmatpush1.msra.mxu0 %v277
    %296 = vmatprep.subr.mxu0 0.0
    %297 = vmatpush1.msra.mxu0 %v278
    %298 = vmatprep.subr.mxu0 0.0
    %299 = vmatpush1.msra.mxu0 %v279
    %300 = vmatprep.subr.mxu0 0.0
    %301 = vmatpush1.msra.mxu0 %v280
    %302 = vmatprep.subr.mxu0 0.0
    %303 = vmatpush1.msra.mxu0 %v281
    %304 = vmatprep.subr.mxu0 0.0
    %305 = vmatpush1.msra.mxu0 %v282
    %306 = vmatprep.subr.mxu0 0.0
    %307 = vmatpush1.msra.mxu0 %v283
    %308 = vmatprep.subr.mxu0 0.0
    %309 = vmatpush1.msra.mxu0 %v284
    %310 = vmatprep.subr.mxu0 0.0
    %311 = vmatpush1.msra.mxu0 %v285
    %312 = vmatprep.subr.mxu0 0.0
    %313 = vmatpush1.msra.mxu0 %v286
    %314 = vmatprep.subr.mxu0 0.0
    %315 = vmatpush1.msra.mxu0 %v287
    %316 = vmatprep.subr.mxu0 0.0
    %317 = vmatpush1.msra.mxu0 %v288
    %318 = vmatprep.subr.mxu0 0.0
    %319 = vmatpush1.msra.mxu0 %v289
    %320 = vmatprep.subr.mxu0 0.0
    %321 = vmatpush1.msra.mxu0 %v290
    %322 = vmatprep.subr.mxu0 0.0
    %323 = vmatpush1.msra.mxu0 %v291
    %324 = vmatprep.subr.mxu0 0.0
    %325 = vmatpush1.msra.mxu0 0.0
    %326 = vmatprep.subr.mxu0 0.0
    %327 = vmatpush1.msra.mxu0 0.0
    %328 = vmatprep.subr.mxu0 0.0
    %329 = vmatpush1.msra.mxu0 0.0
    %330 = vmatprep.subr.mxu0 0.0
    %331 = vmatpush1.msra.mxu0 0.0
    %332 = vmatprep.subr.mxu0 0.0
    %333 = vmatpush1.msra.mxu0 0.0
    %334 = vmatprep.subr.mxu0 0.0
    %335 = vmatpush1.msra.mxu0 0.0
    %336 = vmatprep.subr.mxu0 0.0
    %337 = vmatpush1.msra.mxu0 0.0
    %338 = vmatprep.subr.mxu0 0.0
    %339 = vmatpush1.msra.mxu0 0.0
    %340 = vmatprep.subr.mxu0 0.0
    %341 = vmatpush1.msra.mxu0 0.0
    %342 = vmatprep.subr.mxu0 0.0
    %343 = vmatpush1.msra.mxu0 0.0
    %344 = vmatprep.subr.mxu0 0.0
    %345 = vmatpush1.msra.mxu0 0.0
    %346 = vmatprep.subr.mxu0 0.0
    %347 = vmatpush1.msra.mxu0 0.0
    %348 = vmatprep.subr.mxu0 0.0
    %349 = vmatpush1.msra.mxu0 0.0
    %350 = vmatprep.subr.mxu0 0.0
    %351 = vmatpush1.msra.mxu0 0.0
    %352 = vmatprep.subr.mxu0 0.0
    %353 = vmatpush1.msra.mxu0 0.0
    %354 = vmatprep.subr.mxu0 0.0
    %355 = vmatpush1.msra.mxu0 0.0
    %356 = vmatprep.mubr.f32.mxu0 0.0
    %357 = vmatmul.mubr.f32.gmra.mrb[0].mxu0 %v182
    %v358 = vpop.f32.mrb[0].mxu0
    %v359 = vadd.f32 0.0, %v358
    %v360 = vpop.f32.mrb[0].mxu0
    %361 = vdwg.mxu0
    %s362 = scalar_lea.vmem [#allocation2], 64
    %v363 = vld [vmem:[%s362] sm:$0xf]
    %v364 = vld [vmem:[%s362 + $0x4] sm:$0xf]
    %v365 = vld [vmem:[%s362 + $0x8] sm:$0xf]
    %v366 = vld [vmem:[%s362 + $0xc] sm:$0xf]
    %v367 = vld [vmem:[%s362 + $0x10] sm:$0xf]
    %v368 = vld [vmem:[%s362 + $0x14] sm:$0xf]
    %v369 = vld [vmem:[%s362 + $0x18] sm:$0xf]
    %v370 = vld [vmem:[%s362 + $0x1c] sm:$0xf]
    %v371 = vld [vmem:[%s362 + $0x20] sm:$0xf]
    %v372 = vld [vmem:[%s362 + $0x24] sm:$0xf]
    %v373 = vld [vmem:[%s362 + $0x28] sm:$0xf]
    %v374 = vld [vmem:[%s362 + $0x2c] sm:$0xf]
    %v375 = vld [vmem:[%s362 + $0x30] sm:$0xf]
    %v376 = vld [vmem:[%s362 + $0x34] sm:$0xf]
    %v377 = vld [vmem:[%s362 + $0x38] sm:$0xf]
    %v378 = vld [vmem:[%s362 + $0x3c] sm:$0xf]
    %v379 = vunpack.c.l.bf16 %v363
    %v380 = vunpack.c.l.bf16 %v364
    %v381 = vunpack.c.l.bf16 %v365
    %v382 = vunpack.c.l.bf16 %v366
    %v383 = vunpack.c.l.bf16 %v367
    %v384 = vunpack.c.l.bf16 %v368
    %v385 = vunpack.c.l.bf16 %v369
    %v386 = vunpack.c.l.bf16 %v370
    %v387 = vunpack.c.l.bf16 %v371
    %v388 = vunpack.c.l.bf16 %v372
    %v389 = vunpack.c.l.bf16 %v373
    %v390 = vunpack.c.l.bf16 %v374
    %v391 = vunpack.c.l.bf16 %v375
    %v392 = vunpack.c.l.bf16 %v376
    %v393 = vunpack.c.l.bf16 %v377
    %v394 = vunpack.c.l.bf16 %v378
    %395 = vmatprep.subr.mxu0 0.0
    %396 = vmatpush1.msra.mxu0 %v379
    %397 = vmatprep.subr.mxu0 0.0
    %398 = vmatpush1.msra.mxu0 %v380
    %399 = vmatprep.subr.mxu0 0.0
    %400 = vmatpush1.msra.mxu0 %v381
    %401 = vmatprep.subr.mxu0 0.0
    %402 = vmatpush1.msra.mxu0 %v382
    %403 = vmatprep.subr.mxu0 0.0
    %404 = vmatpush1.msra.mxu0 %v383
    %405 = vmatprep.subr.mxu0 0.0
    %406 = vmatpush1.msra.mxu0 %v384
    %407 = vmatprep.subr.mxu0 0.0
    %408 = vmatpush1.msra.mxu0 %v385
    %409 = vmatprep.subr.mxu0 0.0
    %410 = vmatpush1.msra.mxu0 %v386
    %411 = vmatprep.subr.mxu0 0.0
    %412 = vmatpush1.msra.mxu0 %v387
    %413 = vmatprep.subr.mxu0 0.0
    %414 = vmatpush1.msra.mxu0 %v388
    %415 = vmatprep.subr.mxu0 0.0
    %416 = vmatpush1.msra.mxu0 %v389
    %417 = vmatprep.subr.mxu0 0.0
    %418 = vmatpush1.msra.mxu0 %v390
    %419 = vmatprep.subr.mxu0 0.0
    %420 = vmatpush1.msra.mxu0 %v391
    %421 = vmatprep.subr.mxu0 0.0
    %422 = vmatpush1.msra.mxu0 %v392
    %423 = vmatprep.subr.mxu0 0.0
    %424 = vmatpush1.msra.mxu0 %v393
    %425 = vmatprep.subr.mxu0 0.0
    %426 = vmatpush1.msra.mxu0 %v394
    %427 = vmatprep.subr.mxu0 0.0
    %428 = vmatpush1.msra.mxu0 0.0
    %429 = vmatprep.subr.mxu0 0.0
    %430 = vmatpush1.msra.mxu0 0.0
    %431 = vmatprep.subr.mxu0 0.0
    %432 = vmatpush1.msra.mxu0 0.0
    %433 = vmatprep.subr.mxu0 0.0
    %434 = vmatpush1.msra.mxu0 0.0
    %435 = vmatprep.subr.mxu0 0.0
    %436 = vmatpush1.msra.mxu0 0.0
    %437 = vmatprep.subr.mxu0 0.0
    %438 = vmatpush1.msra.mxu0 0.0
    %439 = vmatprep.subr.mxu0 0.0
    %440 = vmatpush1.msra.mxu0 0.0
    %441 = vmatprep.subr.mxu0 0.0
    %442 = vmatpush1.msra.mxu0 0.0
    %443 = vmatprep.subr.mxu0 0.0
    %444 = vmatpush1.msra.mxu0 0.0
    %445 = vmatprep.subr.mxu0 0.0
    %446 = vmatpush1.msra.mxu0 0.0
    %447 = vmatprep.subr.mxu0 0.0
    %448 = vmatpush1.msra.mxu0 0.0
    %449 = vmatprep.subr.mxu0 0.0
    %450 = vmatpush1.msra.mxu0 0.0
    %451 = vmatprep.subr.mxu0 0.0
    %452 = vmatpush1.msra.mxu0 0.0
    %453 = vmatprep.subr.mxu0 0.0
    %454 = vmatpush1.msra.mxu0 0.0
    %455 = vmatprep.subr.mxu0 0.0
    %456 = vmatpush1.msra.mxu0 0.0
    %457 = vmatprep.subr.mxu0 0.0
    %458 = vmatpush1.msra.mxu0 0.0
    %459 = vmatprep.mubr.f32.mxu0 0.0
    %460 = vmatmul.mubr.f32.gmra.mrb[0].mxu0 %v187
    %v461 = vpop.f32.mrb[0].mxu0
    %v462 = vadd.f32 0.0, %v461
    %v463 = vpop.f32.mrb[0].mxu0
    %464 = vdwg.mxu0
    %s465 = scalar_lea.vmem [#allocation2], 128
    %v466 = vld [vmem:[%s465] sm:$0xf]
    %v467 = vld [vmem:[%s465 + $0x4] sm:$0xf]
    %v468 = vld [vmem:[%s465 + $0x8] sm:$0xf]
    %v469 = vld [vmem:[%s465 + $0xc] sm:$0xf]
    %v470 = vld [vmem:[%s465 + $0x10] sm:$0xf]
    %v471 = vld [vmem:[%s465 + $0x14] sm:$0xf]
    %v472 = vld [vmem:[%s465 + $0x18] sm:$0xf]
    %v473 = vld [vmem:[%s465 + $0x1c] sm:$0xf]
    %v474 = vld [vmem:[%s465 + $0x20] sm:$0xf]
    %v475 = vld [vmem:[%s465 + $0x24] sm:$0xf]
    %v476 = vld [vmem:[%s465 + $0x28] sm:$0xf]
    %v477 = vld [vmem:[%s465 + $0x2c] sm:$0xf]
    %v478 = vld [vmem:[%s465 + $0x30] sm:$0xf]
    %v479 = vld [vmem:[%s465 + $0x34] sm:$0xf]
    %v480 = vld [vmem:[%s465 + $0x38] sm:$0xf]
    %v481 = vld [vmem:[%s465 + $0x3c] sm:$0xf]
    %v482 = vunpack.c.l.bf16 %v466
    %v483 = vunpack.c.l.bf16 %v467
    %v484 = vunpack.c.l.bf16 %v468
    %v485 = vunpack.c.l.bf16 %v469
    %v486 = vunpack.c.l.bf16 %v470
    %v487 = vunpack.c.l.bf16 %v471
    %v488 = vunpack.c.l.bf16 %v472
    %v489 = vunpack.c.l.bf16 %v473
    %v490 = vunpack.c.l.bf16 %v474
    %v491 = vunpack.c.l.bf16 %v475
    %v492 = vunpack.c.l.bf16 %v476
    %v493 = vunpack.c.l.bf16 %v477
    %v494 = vunpack.c.l.bf16 %v478
    %v495 = vunpack.c.l.bf16 %v479
    %v496 = vunpack.c.l.bf16 %v480
    %v497 = vunpack.c.l.bf16 %v481
    %498 = vmatprep.subr.mxu0 0.0
    %499 = vmatpush1.msra.mxu0 %v482
    %500 = vmatprep.subr.mxu0 0.0
    %501 = vmatpush1.msra.mxu0 %v483
    %502 = vmatprep.subr.mxu0 0.0
    %503 = vmatpush1.msra.mxu0 %v484
    %504 = vmatprep.subr.mxu0 0.0
    %505 = vmatpush1.msra.mxu0 %v485
    %506 = vmatprep.subr.mxu0 0.0
    %507 = vmatpush1.msra.mxu0 %v486
    %508 = vmatprep.subr.mxu0 0.0
    %509 = vmatpush1.msra.mxu0 %v487
    %510 = vmatprep.subr.mxu0 0.0
    %511 = vmatpush1.msra.mxu0 %v488
    %512 = vmatprep.subr.mxu0 0.0
    %513 = vmatpush1.msra.mxu0 %v489
    %514 = vmatprep.subr.mxu0 0.0
    %515 = vmatpush1.msra.mxu0 %v490
    %516 = vmatprep.subr.mxu0 0.0
    %517 = vmatpush1.msra.mxu0 %v491
    %518 = vmatprep.subr.mxu0 0.0
    %519 = vmatpush1.msra.mxu0 %v492
    %520 = vmatprep.subr.mxu0 0.0
    %521 = vmatpush1.msra.mxu0 %v493
    %522 = vmatprep.subr.mxu0 0.0
    %523 = vmatpush1.msra.mxu0 %v494
    %524 = vmatprep.subr.mxu0 0.0
    %525 = vmatpush1.msra.mxu0 %v495
    %526 = vmatprep.subr.mxu0 0.0
    %527 = vmatpush1.msra.mxu0 %v496
    %528 = vmatprep.subr.mxu0 0.0
    %529 = vmatpush1.msra.mxu0 %v497
    %530 = vmatprep.subr.mxu0 0.0
    %531 = vmatpush1.msra.mxu0 0.0
    %532 = vmatprep.subr.mxu0 0.0
    %533 = vmatpush1.msra.mxu0 0.0
    %534 = vmatprep.subr.mxu0 0.0
    %535 = vmatpush1.msra.mxu0 0.0
    %536 = vmatprep.subr.mxu0 0.0
    %537 = vmatpush1.msra.mxu0 0.0
    %538 = vmatprep.subr.mxu0 0.0
    %539 = vmatpush1.msra.mxu0 0.0
    %540 = vmatprep.subr.mxu0 0.0
    %541 = vmatpush1.msra.mxu0 0.0
    %542 = vmatprep.subr.mxu0 0.0
    %543 = vmatpush1.msra.mxu0 0.0
    %544 = vmatprep.subr.mxu0 0.0
    %545 = vmatpush1.msra.mxu0 0.0
    %546 = vmatprep.subr.mxu0 0.0
    %547 = vmatpush1.msra.mxu0 0.0
    %548 = vmatprep.subr.mxu0 0.0
    %549 = vmatpush1.msra.mxu0 0.0
    %550 = vmatprep.subr.mxu0 0.0
    %551 = vmatpush1.msra.mxu0 0.0
    %552 = vmatprep.subr.mxu0 0.0
    %553 = vmatpush1.msra.mxu0 0.0
    %554 = vmatprep.subr.mxu0 0.0
    %555 = vmatpush1.msra.mxu0 0.0
    %556 = vmatprep.subr.mxu0 0.0
    %557 = vmatpush1.msra.mxu0 0.0
    %558 = vmatprep.subr.mxu0 0.0
    %559 = vmatpush1.msra.mxu0 0.0
    %560 = vmatprep.subr.mxu0 0.0
    %561 = vmatpush1.msra.mxu0 0.0
    %562 = vmatprep.mubr.f32.mxu0 0.0
    %563 = vmatmul.mubr.f32.gmra.mrb[0].mxu0 %v192
    %v564 = vpop.f32.mrb[0].mxu0
    %v565 = vadd.f32 0.0, %v564
    %v566 = vpop.f32.mrb[0].mxu0
    %567 = vdwg.mxu0
    %s568 = scalar_lea.vmem [#allocation2], 192
    %v569 = vld [vmem:[%s568] sm:$0xf]
    %v570 = vld [vmem:[%s568 + $0x4] sm:$0xf]
    %v571 = vld [vmem:[%s568 + $0x8] sm:$0xf]
    %v572 = vld [vmem:[%s568 + $0xc] sm:$0xf]
    %v573 = vld [vmem:[%s568 + $0x10] sm:$0xf]
    %v574 = vld [vmem:[%s568 + $0x14] sm:$0xf]
    %v575 = vld [vmem:[%s568 + $0x18] sm:$0xf]
    %v576 = vld [vmem:[%s568 + $0x1c] sm:$0xf]
    %v577 = vld [vmem:[%s568 + $0x20] sm:$0xf]
    %v578 = vld [vmem:[%s568 + $0x24] sm:$0xf]
    %v579 = vld [vmem:[%s568 + $0x28] sm:$0xf]
    %v580 = vld [vmem:[%s568 + $0x2c] sm:$0xf]
    %v581 = vld [vmem:[%s568 + $0x30] sm:$0xf]
    %v582 = vld [vmem:[%s568 + $0x34] sm:$0xf]
    %v583 = vld [vmem:[%s568 + $0x38] sm:$0xf]
    %v584 = vld [vmem:[%s568 + $0x3c] sm:$0xf]
    %v585 = vunpack.c.l.bf16 %v569
    %v586 = vunpack.c.l.bf16 %v570
    %v587 = vunpack.c.l.bf16 %v571
    %v588 = vunpack.c.l.bf16 %v572
    %v589 = vunpack.c.l.bf16 %v573
    %v590 = vunpack.c.l.bf16 %v574
    %v591 = vunpack.c.l.bf16 %v575
    %v592 = vunpack.c.l.bf16 %v576
    %v593 = vunpack.c.l.bf16 %v577
    %v594 = vunpack.c.l.bf16 %v578
    %v595 = vunpack.c.l.bf16 %v579
    %v596 = vunpack.c.l.bf16 %v580
    %v597 = vunpack.c.l.bf16 %v581
    %v598 = vunpack.c.l.bf16 %v582
    %v599 = vunpack.c.l.bf16 %v583
    %v600 = vunpack.c.l.bf16 %v584
    %601 = vmatprep.subr.mxu0 0.0
    %602 = vmatpush1.msra.mxu0 %v585
    %603 = vmatprep.subr.mxu0 0.0
    %604 = vmatpush1.msra.mxu0 %v586
    %605 = vmatprep.subr.mxu0 0.0
    %606 = vmatpush1.msra.mxu0 %v587
    %607 = vmatprep.subr.mxu0 0.0
    %608 = vmatpush1.msra.mxu0 %v588
    %609 = vmatprep.subr.mxu0 0.0
    %610 = vmatpush1.msra.mxu0 %v589
    %611 = vmatprep.subr.mxu0 0.0
    %612 = vmatpush1.msra.mxu0 %v590
    %613 = vmatprep.subr.mxu0 0.0
    %614 = vmatpush1.msra.mxu0 %v591
    %615 = vmatprep.subr.mxu0 0.0
    %616 = vmatpush1.msra.mxu0 %v592
    %617 = vmatprep.subr.mxu0 0.0
    %618 = vmatpush1.msra.mxu0 %v593
    %619 = vmatprep.subr.mxu0 0.0
    %620 = vmatpush1.msra.mxu0 %v594
    %621 = vmatprep.subr.mxu0 0.0
    %622 = vmatpush1.msra.mxu0 %v595
    %623 = vmatprep.subr.mxu0 0.0
    %624 = vmatpush1.msra.mxu0 %v596
    %625 = vmatprep.subr.mxu0 0.0
    %626 = vmatpush1.msra.mxu0 %v597
    %627 = vmatprep.subr.mxu0 0.0
    %628 = vmatpush1.msra.mxu0 %v598
    %629 = vmatprep.subr.mxu0 0.0
    %630 = vmatpush1.msra.mxu0 %v599
    %631 = vmatprep.subr.mxu0 0.0
    %632 = vmatpush1.msra.mxu0 %v600
    %633 = vmatprep.subr.mxu0 0.0
    %634 = vmatpush1.msra.mxu0 0.0
    %635 = vmatprep.subr.mxu0 0.0
    %636 = vmatpush1.msra.mxu0 0.0
    %637 = vmatprep.subr.mxu0 0.0
    %638 = vmatpush1.msra.mxu0 0.0
    %639 = vmatprep.subr.mxu0 0.0
    %640 = vmatpush1.msra.mxu0 0.0
    %641 = vmatprep.subr.mxu0 0.0
    %642 = vmatpush1.msra.mxu0 0.0
    %643 = vmatprep.subr.mxu0 0.0
    %644 = vmatpush1.msra.mxu0 0.0
    %645 = vmatprep.subr.mxu0 0.0
    %646 = vmatpush1.msra.mxu0 0.0
    %647 = vmatprep.subr.mxu0 0.0
    %648 = vmatpush1.msra.mxu0 0.0
    %649 = vmatprep.subr.mxu0 0.0
    %650 = vmatpush1.msra.mxu0 0.0
    %651 = vmatprep.subr.mxu0 0.0
    %652 = vmatpush1.msra.mxu0 0.0
    %653 = vmatprep.subr.mxu0 0.0
    %654 = vmatpush1.msra.mxu0 0.0
    %655 = vmatprep.subr.mxu0 0.0
    %656 = vmatpush1.msra.mxu0 0.0
    %657 = vmatprep.subr.mxu0 0.0
    %658 = vmatpush1.msra.mxu0 0.0
    %659 = vmatprep.subr.mxu0 0.0
    %660 = vmatpush1.msra.mxu0 0.0
    %661 = vmatprep.subr.mxu0 0.0
    %662 = vmatpush1.msra.mxu0 0.0
    %663 = vmatprep.subr.mxu0 0.0
    %664 = vmatpush1.msra.mxu0 0.0
    %665 = vmatprep.mubr.f32.mxu0 0.0
    %666 = vmatmul.mubr.f32.gmra.mrb[0].mxu0 %v197
    %v667 = vpop.f32.mrb[0].mxu0
    %v668 = vadd.f32 0.0, %v667
    %v669 = vpop.f32.mrb[0].mxu0
    %670 = vdwg.mxu0
    %s671 = scalar_lea.vmem [#allocation2], 256
    %v672 = vld [vmem:[%s671] sm:$0xf]
    %v673 = vld [vmem:[%s671 + $0x4] sm:$0xf]
    %v674 = vld [vmem:[%s671 + $0x8] sm:$0xf]
    %v675 = vld [vmem:[%s671 + $0xc] sm:$0xf]
    %v676 = vld [vmem:[%s671 + $0x10] sm:$0xf]
    %v677 = vld [vmem:[%s671 + $0x14] sm:$0xf]
    %v678 = vld [vmem:[%s671 + $0x18] sm:$0xf]
    %v679 = vld [vmem:[%s671 + $0x1c] sm:$0xf]
    %v680 = vld [vmem:[%s671 + $0x20] sm:$0xf]
    %v681 = vld [vmem:[%s671 + $0x24] sm:$0xf]
    %v682 = vld [vmem:[%s671 + $0x28] sm:$0xf]
    %v683 = vld [vmem:[%s671 + $0x2c] sm:$0xf]
    %v684 = vld [vmem:[%s671 + $0x30] sm:$0xf]
    %v685 = vld [vmem:[%s671 + $0x34] sm:$0xf]
    %v686 = vld [vmem:[%s671 + $0x38] sm:$0xf]
    %v687 = vld [vmem:[%s671 + $0x3c] sm:$0xf]
    %v688 = vunpack.c.l.bf16 %v672
    %v689 = vunpack.c.l.bf16 %v673
    %v690 = vunpack.c.l.bf16 %v674
    %v691 = vunpack.c.l.bf16 %v675
    %v692 = vunpack.c.l.bf16 %v676
    %v693 = vunpack.c.l.bf16 %v677
    %v694 = vunpack.c.l.bf16 %v678
    %v695 = vunpack.c.l.bf16 %v679
    %v696 = vunpack.c.l.bf16 %v680
    %v697 = vunpack.c.l.bf16 %v681
    %v698 = vunpack.c.l.bf16 %v682
    %v699 = vunpack.c.l.bf16 %v683
    %v700 = vunpack.c.l.bf16 %v684
    %v701 = vunpack.c.l.bf16 %v685
    %v702 = vunpack.c.l.bf16 %v686
    %v703 = vunpack.c.l.bf16 %v687
    %704 = vmatprep.subr.mxu0 0.0
    %705 = vmatpush1.msra.mxu0 %v688
    %706 = vmatprep.subr.mxu0 0.0
    %707 = vmatpush1.msra.mxu0 %v689
    %708 = vmatprep.subr.mxu0 0.0
    %709 = vmatpush1.msra.mxu0 %v690
    %710 = vmatprep.subr.mxu0 0.0
    %711 = vmatpush1.msra.mxu0 %v691
    %712 = vmatprep.subr.mxu0 0.0
    %713 = vmatpush1.msra.mxu0 %v692
    %714 = vmatprep.subr.mxu0 0.0
    %715 = vmatpush1.msra.mxu0 %v693
    %716 = vmatprep.subr.mxu0 0.0
    %717 = vmatpush1.msra.mxu0 %v694
    %718 = vmatprep.subr.mxu0 0.0
    %719 = vmatpush1.msra.mxu0 %v695
    %720 = vmatprep.subr.mxu0 0.0
    %721 = vmatpush1.msra.mxu0 %v696
    %722 = vmatprep.subr.mxu0 0.0
    %723 = vmatpush1.msra.mxu0 %v697
    %724 = vmatprep.subr.mxu0 0.0
    %725 = vmatpush1.msra.mxu0 %v698
    %726 = vmatprep.subr.mxu0 0.0
    %727 = vmatpush1.msra.mxu0 %v699
    %728 = vmatprep.subr.mxu0 0.0
    %729 = vmatpush1.msra.mxu0 %v700
    %730 = vmatprep.subr.mxu0 0.0
    %731 = vmatpush1.msra.mxu0 %v701
    %732 = vmatprep.subr.mxu0 0.0
    %733 = vmatpush1.msra.mxu0 %v702
    %734 = vmatprep.subr.mxu0 0.0
    %735 = vmatpush1.msra.mxu0 %v703
    %736 = vmatprep.subr.mxu0 0.0
    %737 = vmatpush1.msra.mxu0 0.0
    %738 = vmatprep.subr.mxu0 0.0
    %739 = vmatpush1.msra.mxu0 0.0
    %740 = vmatprep.subr.mxu0 0.0
    %741 = vmatpush1.msra.mxu0 0.0
    %742 = vmatprep.subr.mxu0 0.0
    %743 = vmatpush1.msra.mxu0 0.0
    %744 = vmatprep.subr.mxu0 0.0
    %745 = vmatpush1.msra.mxu0 0.0
    %746 = vmatprep.subr.mxu0 0.0
    %747 = vmatpush1.msra.mxu0 0.0
    %748 = vmatprep.subr.mxu0 0.0
    %749 = vmatpush1.msra.mxu0 0.0
    %750 = vmatprep.subr.mxu0 0.0
    %751 = vmatpush1.msra.mxu0 0.0
    %752 = vmatprep.subr.mxu0 0.0
    %753 = vmatpush1.msra.mxu0 0.0
    %754 = vmatprep.subr.mxu0 0.0
    %755 = vmatpush1.msra.mxu0 0.0
    %756 = vmatprep.subr.mxu0 0.0
    %757 = vmatpush1.msra.mxu0 0.0
    %758 = vmatprep.subr.mxu0 0.0
    %759 = vmatpush1.msra.mxu0 0.0
    %760 = vmatprep.subr.mxu0 0.0
    %761 = vmatpush1.msra.mxu0 0.0
    %762 = vmatprep.subr.mxu0 0.0
    %763 = vmatpush1.msra.mxu0 0.0
    %764 = vmatprep.subr.mxu0 0.0
    %765 = vmatpush1.msra.mxu0 0.0
    %766 = vmatprep.subr.mxu0 0.0
    %767 = vmatpush1.msra.mxu0 0.0
    %768 = vmatprep.mubr.f32.mxu0 0.0
    %769 = vmatmul.mubr.f32.gmra.mrb[0].mxu0 %v202
    %v770 = vpop.f32.mrb[0].mxu0
    %v771 = vadd.f32 0.0, %v770
    %v772 = vpop.f32.mrb[0].mxu0
    %773 = vdwg.mxu0
    %s774 = scalar_lea.vmem [#allocation2], 320
    %v775 = vld [vmem:[%s774] sm:$0xf]
    %v776 = vld [vmem:[%s774 + $0x4] sm:$0xf]
    %v777 = vld [vmem:[%s774 + $0x8] sm:$0xf]
    %v778 = vld [vmem:[%s774 + $0xc] sm:$0xf]
    %v779 = vld [vmem:[%s774 + $0x10] sm:$0xf]
    %v780 = vld [vmem:[%s774 + $0x14] sm:$0xf]
    %v781 = vld [vmem:[%s774 + $0x18] sm:$0xf]
    %v782 = vld [vmem:[%s774 + $0x1c] sm:$0xf]
    %v783 = vld [vmem:[%s774 + $0x20] sm:$0xf]
    %v784 = vld [vmem:[%s774 + $0x24] sm:$0xf]
    %v785 = vld [vmem:[%s774 + $0x28] sm:$0xf]
    %v786 = vld [vmem:[%s774 + $0x2c] sm:$0xf]
    %v787 = vld [vmem:[%s774 + $0x30] sm:$0xf]
    %v788 = vld [vmem:[%s774 + $0x34] sm:$0xf]
    %v789 = vld [vmem:[%s774 + $0x38] sm:$0xf]
    %v790 = vld [vmem:[%s774 + $0x3c] sm:$0xf]
    %v791 = vunpack.c.l.bf16 %v775
    %v792 = vunpack.c.l.bf16 %v776
    %v793 = vunpack.c.l.bf16 %v777
    %v794 = vunpack.c.l.bf16 %v778
    %v795 = vunpack.c.l.bf16 %v779
    %v796 = vunpack.c.l.bf16 %v780
    %v797 = vunpack.c.l.bf16 %v781
    %v798 = vunpack.c.l.bf16 %v782
    %v799 = vunpack.c.l.bf16 %v783
    %v800 = vunpack.c.l.bf16 %v784
    %v801 = vunpack.c.l.bf16 %v785
    %v802 = vunpack.c.l.bf16 %v786
    %v803 = vunpack.c.l.bf16 %v787
    %v804 = vunpack.c.l.bf16 %v788
    %v805 = vunpack.c.l.bf16 %v789
    %v806 = vunpack.c.l.bf16 %v790
    %807 = vmatprep.subr.mxu0 0.0
    %808 = vmatpush1.msra.mxu0 %v791
    %809 = vmatprep.subr.mxu0 0.0
    %810 = vmatpush1.msra.mxu0 %v792
    %811 = vmatprep.subr.mxu0 0.0
    %812 = vmatpush1.msra.mxu0 %v793
    %813 = vmatprep.subr.mxu0 0.0
    %814 = vmatpush1.msra.mxu0 %v794
    %815 = vmatprep.subr.mxu0 0.0
    %816 = vmatpush1.msra.mxu0 %v795
    %817 = vmatprep.subr.mxu0 0.0
    %818 = vmatpush1.msra.mxu0 %v796
    %819 = vmatprep.subr.mxu0 0.0
    %820 = vmatpush1.msra.mxu0 %v797
    %821 = vmatprep.subr.mxu0 0.0
    %822 = vmatpush1.msra.mxu0 %v798
    %823 = vmatprep.subr.mxu0 0.0
    %824 = vmatpush1.msra.mxu0 %v799
    %825 = vmatprep.subr.mxu0 0.0
    %826 = vmatpush1.msra.mxu0 %v800
    %827 = vmatprep.subr.mxu0 0.0
    %828 = vmatpush1.msra.mxu0 %v801
    %829 = vmatprep.subr.mxu0 0.0
    %830 = vmatpush1.msra.mxu0 %v802
    %831 = vmatprep.subr.mxu0 0.0
    %832 = vmatpush1.msra.mxu0 %v803
    %833 = vmatprep.subr.mxu0 0.0
    %834 = vmatpush1.msra.mxu0 %v804
    %835 = vmatprep.subr.mxu0 0.0
    %836 = vmatpush1.msra.mxu0 %v805
    %837 = vmatprep.subr.mxu0 0.0
    %838 = vmatpush1.msra.mxu0 %v806
    %839 = vmatprep.subr.mxu0 0.0
    %840 = vmatpush1.msra.mxu0 0.0
    %841 = vmatprep.subr.mxu0 0.0
    %842 = vmatpush1.msra.mxu0 0.0
    %843 = vmatprep.subr.mxu0 0.0
    %844 = vmatpush1.msra.mxu0 0.0
    %845 = vmatprep.subr.mxu0 0.0
    %846 = vmatpush1.msra.mxu0 0.0
    %847 = vmatprep.subr.mxu0 0.0
    %848 = vmatpush1.msra.mxu0 0.0
    %849 = vmatprep.subr.mxu0 0.0
    %850 = vmatpush1.msra.mxu0 0.0
    %851 = vmatprep.subr.mxu0 0.0
    %852 = vmatpush1.msra.mxu0 0.0
    %853 = vmatprep.subr.mxu0 0.0
    %854 = vmatpush1.msra.mxu0 0.0
    %855 = vmatprep.subr.mxu0 0.0
    %856 = vmatpush1.msra.mxu0 0.0
    %857 = vmatprep.subr.mxu0 0.0
    %858 = vmatpush1.msra.mxu0 0.0
    %859 = vmatprep.subr.mxu0 0.0
    %860 = vmatpush1.msra.mxu0 0.0
    %861 = vmatprep.subr.mxu0 0.0
    %862 = vmatpush1.msra.mxu0 0.0
    %863 = vmatprep.subr.mxu0 0.0
    %864 = vmatpush1.msra.mxu0 0.0
    %865 = vmatprep.subr.mxu0 0.0
    %866 = vmatpush1.msra.mxu0 0.0
    %867 = vmatprep.subr.mxu0 0.0
    %868 = vmatpush1.msra.mxu0 0.0
    %869 = vmatprep.subr.mxu0 0.0
    %870 = vmatpush1.msra.mxu0 0.0
    %871 = vmatprep.mubr.f32.mxu0 0.0
    %872 = vmatmul.mubr.f32.gmra.mrb[0].mxu0 %v207
    %v873 = vpop.f32.mrb[0].mxu0
    %v874 = vadd.f32 0.0, %v873
    %v875 = vpop.f32.mrb[0].mxu0
    %876 = vdwg.mxu0
    %s877 = scalar_lea.vmem [#allocation2], 384
    %v878 = vld [vmem:[%s877] sm:$0xf]
    %v879 = vld [vmem:[%s877 + $0x4] sm:$0xf]
    %v880 = vld [vmem:[%s877 + $0x8] sm:$0xf]
    %v881 = vld [vmem:[%s877 + $0xc] sm:$0xf]
    %v882 = vld [vmem:[%s877 + $0x10] sm:$0xf]
    %v883 = vld [vmem:[%s877 + $0x14] sm:$0xf]
    %v884 = vld [vmem:[%s877 + $0x18] sm:$0xf]
    %v885 = vld [vmem:[%s877 + $0x1c] sm:$0xf]
    %v886 = vld [vmem:[%s877 + $0x20] sm:$0xf]
    %v887 = vld [vmem:[%s877 + $0x24] sm:$0xf]
    %v888 = vld [vmem:[%s877 + $0x28] sm:$0xf]
    %v889 = vld [vmem:[%s877 + $0x2c] sm:$0xf]
    %v890 = vld [vmem:[%s877 + $0x30] sm:$0xf]
    %v891 = vld [vmem:[%s877 + $0x34] sm:$0xf]
    %v892 = vld [vmem:[%s877 + $0x38] sm:$0xf]
    %v893 = vld [vmem:[%s877 + $0x3c] sm:$0xf]
    %v894 = vunpack.c.l.bf16 %v878
    %v895 = vunpack.c.l.bf16 %v879
    %v896 = vunpack.c.l.bf16 %v880
    %v897 = vunpack.c.l.bf16 %v881
    %v898 = vunpack.c.l.bf16 %v882
    %v899 = vunpack.c.l.bf16 %v883
    %v900 = vunpack.c.l.bf16 %v884
    %v901 = vunpack.c.l.bf16 %v885
    %v902 = vunpack.c.l.bf16 %v886
    %v903 = vunpack.c.l.bf16 %v887
    %v904 = vunpack.c.l.bf16 %v888
    %v905 = vunpack.c.l.bf16 %v889
    %v906 = vunpack.c.l.bf16 %v890
    %v907 = vunpack.c.l.bf16 %v891
    %v908 = vunpack.c.l.bf16 %v892
    %v909 = vunpack.c.l.bf16 %v893
    %910 = vmatprep.subr.mxu0 0.0
    %911 = vmatpush1.msra.mxu0 %v894
    %912 = vmatprep.subr.mxu0 0.0
    %913 = vmatpush1.msra.mxu0 %v895
    %914 = vmatprep.subr.mxu0 0.0
    %915 = vmatpush1.msra.mxu0 %v896
    %916 = vmatprep.subr.mxu0 0.0
    %917 = vmatpush1.msra.mxu0 %v897
    %918 = vmatprep.subr.mxu0 0.0
    %919 = vmatpush1.msra.mxu0 %v898
    %920 = vmatprep.subr.mxu0 0.0
    %921 = vmatpush1.msra.mxu0 %v899
    %922 = vmatprep.subr.mxu0 0.0
    %923 = vmatpush1.msra.mxu0 %v900
    %924 = vmatprep.subr.mxu0 0.0
    %925 = vmatpush1.msra.mxu0 %v901
    %926 = vmatprep.subr.mxu0 0.0
    %927 = vmatpush1.msra.mxu0 %v902
    %928 = vmatprep.subr.mxu0 0.0
    %929 = vmatpush1.msra.mxu0 %v903
    %930 = vmatprep.subr.mxu0 0.0
    %931 = vmatpush1.msra.mxu0 %v904
    %932 = vmatprep.subr.mxu0 0.0
    %933 = vmatpush1.msra.mxu0 %v905
    %934 = vmatprep.subr.mxu0 0.0
    %935 = vmatpush1.msra.mxu0 %v906
    %936 = vmatprep.subr.mxu0 0.0
    %937 = vmatpush1.msra.mxu0 %v907
    %938 = vmatprep.subr.mxu0 0.0
    %939 = vmatpush1.msra.mxu0 %v908
    %940 = vmatprep.subr.mxu0 0.0
    %941 = vmatpush1.msra.mxu0 %v909
    %942 = vmatprep.subr.mxu0 0.0
    %943 = vmatpush1.msra.mxu0 0.0
    %944 = vmatprep.subr.mxu0 0.0
    %945 = vmatpush1.msra.mxu0 0.0
    %946 = vmatprep.subr.mxu0 0.0
    %947 = vmatpush1.msra.mxu0 0.0
    %948 = vmatprep.subr.mxu0 0.0
    %949 = vmatpush1.msra.mxu0 0.0
    %950 = vmatprep.subr.mxu0 0.0
    %951 = vmatpush1.msra.mxu0 0.0
    %952 = vmatprep.subr.mxu0 0.0
    %953 = vmatpush1.msra.mxu0 0.0
    %954 = vmatprep.subr.mxu0 0.0
    %955 = vmatpush1.msra.mxu0 0.0
    %956 = vmatprep.subr.mxu0 0.0
    %957 = vmatpush1.msra.mxu0 0.0
    %958 = vmatprep.subr.mxu0 0.0
    %959 = vmatpush1.msra.mxu0 0.0
    %960 = vmatprep.subr.mxu0 0.0
    %961 = vmatpush1.msra.mxu0 0.0
    %962 = vmatprep.subr.mxu0 0.0
    %963 = vmatpush1.msra.mxu0 0.0
    %964 = vmatprep.subr.mxu0 0.0
    %965 = vmatpush1.msra.mxu0 0.0
    %966 = vmatprep.subr.mxu0 0.0
    %967 = vmatpush1.msra.mxu0 0.0
    %968 = vmatprep.subr.mxu0 0.0
    %969 = vmatpush1.msra.mxu0 0.0
    %970 = vmatprep.subr.mxu0 0.0
    %971 = vmatpush1.msra.mxu0 0.0
    %972 = vmatprep.subr.mxu0 0.0
    %973 = vmatpush1.msra.mxu0 0.0
    %974 = vmatprep.mubr.f32.mxu0 0.0
    %975 = vmatmul.mubr.f32.gmra.mrb[0].mxu0 %v212
    %v976 = vpop.f32.mrb[0].mxu0
    %v977 = vadd.f32 0.0, %v976
    %v978 = vpop.f32.mrb[0].mxu0
    %979 = vdwg.mxu0
    %s980 = scalar_lea.vmem [#allocation2], 448
    %v981 = vld [vmem:[%s980] sm:$0xf]
    %v982 = vld [vmem:[%s980 + $0x4] sm:$0xf]
    %v983 = vld [vmem:[%s980 + $0x8] sm:$0xf]
    %v984 = vld [vmem:[%s980 + $0xc] sm:$0xf]
    %v985 = vld [vmem:[%s980 + $0x10] sm:$0xf]
    %v986 = vld [vmem:[%s980 + $0x14] sm:$0xf]
    %v987 = vld [vmem:[%s980 + $0x18] sm:$0xf]
    %v988 = vld [vmem:[%s980 + $0x1c] sm:$0xf]
    %v989 = vld [vmem:[%s980 + $0x20] sm:$0xf]
    %v990 = vld [vmem:[%s980 + $0x24] sm:$0xf]
    %v991 = vld [vmem:[%s980 + $0x28] sm:$0xf]
    %v992 = vld [vmem:[%s980 + $0x2c] sm:$0xf]
    %v993 = vld [vmem:[%s980 + $0x30] sm:$0xf]
    %v994 = vld [vmem:[%s980 + $0x34] sm:$0xf]
    %v995 = vld [vmem:[%s980 + $0x38] sm:$0xf]
    %v996 = vld [vmem:[%s980 + $0x3c] sm:$0xf]
    %v997 = vunpack.c.l.bf16 %v981
    %v998 = vunpack.c.l.bf16 %v982
    %v999 = vunpack.c.l.bf16 %v983
    %v1000 = vunpack.c.l.bf16 %v984
    %v1001 = vunpack.c.l.bf16 %v985
    %v1002 = vunpack.c.l.bf16 %v986
    %v1003 = vunpack.c.l.bf16 %v987
    %v1004 = vunpack.c.l.bf16 %v988
    %v1005 = vunpack.c.l.bf16 %v989
    %v1006 = vunpack.c.l.bf16 %v990
    %v1007 = vunpack.c.l.bf16 %v991
    %v1008 = vunpack.c.l.bf16 %v992
    %v1009 = vunpack.c.l.bf16 %v993
    %v1010 = vunpack.c.l.bf16 %v994
    %v1011 = vunpack.c.l.bf16 %v995
    %v1012 = vunpack.c.l.bf16 %v996
    %1013 = vmatprep.subr.mxu0 0.0
    %1014 = vmatpush1.msra.mxu0 %v997
    %1015 = vmatprep.subr.mxu0 0.0
    %1016 = vmatpush1.msra.mxu0 %v998
    %1017 = vmatprep.subr.mxu0 0.0
    %1018 = vmatpush1.msra.mxu0 %v999
    %1019 = vmatprep.subr.mxu0 0.0
    %1020 = vmatpush1.msra.mxu0 %v1000
    %1021 = vmatprep.subr.mxu0 0.0
    %1022 = vmatpush1.msra.mxu0 %v1001
    %1023 = vmatprep.subr.mxu0 0.0
    %1024 = vmatpush1.msra.mxu0 %v1002
    %1025 = vmatprep.subr.mxu0 0.0
    %1026 = vmatpush1.msra.mxu0 %v1003
    %1027 = vmatprep.subr.mxu0 0.0
    %1028 = vmatpush1.msra.mxu0 %v1004
    %1029 = vmatprep.subr.mxu0 0.0
    %1030 = vmatpush1.msra.mxu0 %v1005
    %1031 = vmatprep.subr.mxu0 0.0
    %1032 = vmatpush1.msra.mxu0 %v1006
    %1033 = vmatprep.subr.mxu0 0.0
    %1034 = vmatpush1.msra.mxu0 %v1007
    %1035 = vmatprep.subr.mxu0 0.0
    %1036 = vmatpush1.msra.mxu0 %v1008
    %1037 = vmatprep.subr.mxu0 0.0
    %1038 = vmatpush1.msra.mxu0 %v1009
    %1039 = vmatprep.subr.mxu0 0.0
    %1040 = vmatpush1.msra.mxu0 %v1010
    %1041 = vmatprep.subr.mxu0 0.0
    %1042 = vmatpush1.msra.mxu0 %v1011
    %1043 = vmatprep.subr.mxu0 0.0
    %1044 = vmatpush1.msra.mxu0 %v1012
    %1045 = vmatprep.subr.mxu0 0.0
    %1046 = vmatpush1.msra.mxu0 0.0
    %1047 = vmatprep.subr.mxu0 0.0
    %1048 = vmatpush1.msra.mxu0 0.0
    %1049 = vmatprep.subr.mxu0 0.0
    %1050 = vmatpush1.msra.mxu0 0.0
    %1051 = vmatprep.subr.mxu0 0.0
    %1052 = vmatpush1.msra.mxu0 0.0
    %1053 = vmatprep.subr.mxu0 0.0
    %1054 = vmatpush1.msra.mxu0 0.0
    %1055 = vmatprep.subr.mxu0 0.0
    %1056 = vmatpush1.msra.mxu0 0.0
    %1057 = vmatprep.subr.mxu0 0.0
    %1058 = vmatpush1.msra.mxu0 0.0
    %1059 = vmatprep.subr.mxu0 0.0
    %1060 = vmatpush1.msra.mxu0 0.0
    %1061 = vmatprep.subr.mxu0 0.0
    %1062 = vmatpush1.msra.mxu0 0.0
    %1063 = vmatprep.subr.mxu0 0.0
    %1064 = vmatpush1.msra.mxu0 0.0
    %1065 = vmatprep.subr.mxu0 0.0
    %1066 = vmatpush1.msra.mxu0 0.0
    %1067 = vmatprep.subr.mxu0 0.0
    %1068 = vmatpush1.msra.mxu0 0.0
    %1069 = vmatprep.subr.mxu0 0.0
    %1070 = vmatpush1.msra.mxu0 0.0
    %1071 = vmatprep.subr.mxu0 0.0
    %1072 = vmatpush1.msra.mxu0 0.0
    %1073 = vmatprep.subr.mxu0 0.0
    %1074 = vmatpush1.msra.mxu0 0.0
    %1075 = vmatprep.subr.mxu0 0.0
    %1076 = vmatpush1.msra.mxu0 0.0
    %1077 = vmatprep.mubr.f32.mxu0 0.0
    %1078 = vmatmul.mubr.f32.gmra.mrb[0].mxu0 %v217
    %v1079 = vpop.f32.mrb[0].mxu0
    %v1080 = vadd.f32 0.0, %v1079
    %v1081 = vpop.f32.mrb[0].mxu0
    %1082 = vdwg.mxu0
    %s1083 = scalar_lea.vmem [#allocation2], 512
    %v1084 = vld [vmem:[%s1083] sm:$0xf]
    %v1085 = vld [vmem:[%s1083 + $0x4] sm:$0xf]
    %v1086 = vld [vmem:[%s1083 + $0x8] sm:$0xf]
    %v1087 = vld [vmem:[%s1083 + $0xc] sm:$0xf]
    %v1088 = vld [vmem:[%s1083 + $0x10] sm:$0xf]
    %v1089 = vld [vmem:[%s1083 + $0x14] sm:$0xf]
    %v1090 = vld [vmem:[%s1083 + $0x18] sm:$0xf]
    %v1091 = vld [vmem:[%s1083 + $0x1c] sm:$0xf]
    %v1092 = vld [vmem:[%s1083 + $0x20] sm:$0xf]
    %v1093 = vld [vmem:[%s1083 + $0x24] sm:$0xf]
    %v1094 = vld [vmem:[%s1083 + $0x28] sm:$0xf]
    %v1095 = vld [vmem:[%s1083 + $0x2c] sm:$0xf]
    %v1096 = vld [vmem:[%s1083 + $0x30] sm:$0xf]
    %v1097 = vld [vmem:[%s1083 + $0x34] sm:$0xf]
    %v1098 = vld [vmem:[%s1083 + $0x38] sm:$0xf]
    %v1099 = vld [vmem:[%s1083 + $0x3c] sm:$0xf]
    %v1100 = vunpack.c.l.bf16 %v1084
    %v1101 = vunpack.c.l.bf16 %v1085
    %v1102 = vunpack.c.l.bf16 %v1086
    %v1103 = vunpack.c.l.bf16 %v1087
    %v1104 = vunpack.c.l.bf16 %v1088
    %v1105 = vunpack.c.l.bf16 %v1089
    %v1106 = vunpack.c.l.bf16 %v1090
    %v1107 = vunpack.c.l.bf16 %v1091
    %v1108 = vunpack.c.l.bf16 %v1092
    %v1109 = vunpack.c.l.bf16 %v1093
    %v1110 = vunpack.c.l.bf16 %v1094
    %v1111 = vunpack.c.l.bf16 %v1095
    %v1112 = vunpack.c.l.bf16 %v1096
    %v1113 = vunpack.c.l.bf16 %v1097
    %v1114 = vunpack.c.l.bf16 %v1098
    %v1115 = vunpack.c.l.bf16 %v1099
    %1116 = vmatprep.subr.mxu0 0.0
    %1117 = vmatpush1.msra.mxu0 %v1100
    %1118 = vmatprep.subr.mxu0 0.0
    %1119 = vmatpush1.msra.mxu0 %v1101
    %1120 = vmatprep.subr.mxu0 0.0
    %1121 = vmatpush1.msra.mxu0 %v1102
    %1122 = vmatprep.subr.mxu0 0.0
    %1123 = vmatpush1.msra.mxu0 %v1103
    %1124 = vmatprep.subr.mxu0 0.0
    %1125 = vmatpush1.msra.mxu0 %v1104
    %1126 = vmatprep.subr.mxu0 0.0
    %1127 = vmatpush1.msra.mxu0 %v1105
    %1128 = vmatprep.subr.mxu0 0.0
    %1129 = vmatpush1.msra.mxu0 %v1106
    %1130 = vmatprep.subr.mxu0 0.0
    %1131 = vmatpush1.msra.mxu0 %v1107
    %1132 = vmatprep.subr.mxu0 0.0
    %1133 = vmatpush1.msra.mxu0 %v1108
    %1134 = vmatprep.subr.mxu0 0.0
    %1135 = vmatpush1.msra.mxu0 %v1109
    %1136 = vmatprep.subr.mxu0 0.0
    %1137 = vmatpush1.msra.mxu0 %v1110
    %1138 = vmatprep.subr.mxu0 0.0
    %1139 = vmatpush1.msra.mxu0 %v1111
    %1140 = vmatprep.subr.mxu0 0.0
    %1141 = vmatpush1.msra.mxu0 %v1112
    %1142 = vmatprep.subr.mxu0 0.0
    %1143 = vmatpush1.msra.mxu0 %v1113
    %1144 = vmatprep.subr.mxu0 0.0
    %1145 = vmatpush1.msra.mxu0 %v1114
    %1146 = vmatprep.subr.mxu0 0.0
    %1147 = vmatpush1.msra.mxu0 %v1115
    %1148 = vmatprep.subr.mxu0 0.0
    %1149 = vmatpush1.msra.mxu0 0.0
    %1150 = vmatprep.subr.mxu0 0.0
    %1151 = vmatpush1.msra.mxu0 0.0
    %1152 = vmatprep.subr.mxu0 0.0
    %1153 = vmatpush1.msra.mxu0 0.0
    %1154 = vmatprep.subr.mxu0 0.0
    %1155 = vmatpush1.msra.mxu0 0.0
    %1156 = vmatprep.subr.mxu0 0.0
    %1157 = vmatpush1.msra.mxu0 0.0
    %1158 = vmatprep.subr.mxu0 0.0
    %1159 = vmatpush1.msra.mxu0 0.0
    %1160 = vmatprep.subr.mxu0 0.0
    %1161 = vmatpush1.msra.mxu0 0.0
    %1162 = vmatprep.subr.mxu0 0.0
    %1163 = vmatpush1.msra.mxu0 0.0
    %1164 = vmatprep.subr.mxu0 0.0
    %1165 = vmatpush1.msra.mxu0 0.0
    %1166 = vmatprep.subr.mxu0 0.0
    %1167 = vmatpush1.msra.mxu0 0.0
    %1168 = vmatprep.subr.mxu0 0.0
    %1169 = vmatpush1.msra.mxu0 0.0
    %1170 = vmatprep.subr.mxu0 0.0
    %1171 = vmatpush1.msra.mxu0 0.0
    %1172 = vmatprep.subr.mxu0 0.0
    %1173 = vmatpush1.msra.mxu0 0.0
    %1174 = vmatprep.subr.mxu0 0.0
    %1175 = vmatpush1.msra.mxu0 0.0
    %1176 = vmatprep.subr.mxu0 0.0
    %1177 = vmatpush1.msra.mxu0 0.0
    %1178 = vmatprep.subr.mxu0 0.0
    %1179 = vmatpush1.msra.mxu0 0.0
    %1180 = vmatprep.mubr.f32.mxu0 0.0
    %1181 = vmatmul.mubr.f32.gmra.mrb[0].mxu0 %v222
    %v1182 = vpop.f32.mrb[0].mxu0
    %v1183 = vadd.f32 0.0, %v1182
    %v1184 = vpop.f32.mrb[0].mxu0
    %1185 = vdwg.mxu0
    %s1186 = scalar_lea.vmem [#allocation2], 576
    %v1187 = vld [vmem:[%s1186] sm:$0xf]
    %v1188 = vld [vmem:[%s1186 + $0x4] sm:$0xf]
    %v1189 = vld [vmem:[%s1186 + $0x8] sm:$0xf]
    %v1190 = vld [vmem:[%s1186 + $0xc] sm:$0xf]
    %v1191 = vld [vmem:[%s1186 + $0x10] sm:$0xf]
    %v1192 = vld [vmem:[%s1186 + $0x14] sm:$0xf]
    %v1193 = vld [vmem:[%s1186 + $0x18] sm:$0xf]
    %v1194 = vld [vmem:[%s1186 + $0x1c] sm:$0xf]
    %v1195 = vld [vmem:[%s1186 + $0x20] sm:$0xf]
    %v1196 = vld [vmem:[%s1186 + $0x24] sm:$0xf]
    %v1197 = vld [vmem:[%s1186 + $0x28] sm:$0xf]
    %v1198 = vld [vmem:[%s1186 + $0x2c] sm:$0xf]
    %v1199 = vld [vmem:[%s1186 + $0x30] sm:$0xf]
    %v1200 = vld [vmem:[%s1186 + $0x34] sm:$0xf]
    %v1201 = vld [vmem:[%s1186 + $0x38] sm:$0xf]
    %v1202 = vld [vmem:[%s1186 + $0x3c] sm:$0xf]
    %v1203 = vunpack.c.l.bf16 %v1187
    %v1204 = vunpack.c.l.bf16 %v1188
    %v1205 = vunpack.c.l.bf16 %v1189
    %v1206 = vunpack.c.l.bf16 %v1190
    %v1207 = vunpack.c.l.bf16 %v1191
    %v1208 = vunpack.c.l.bf16 %v1192
    %v1209 = vunpack.c.l.bf16 %v1193
    %v1210 = vunpack.c.l.bf16 %v1194
    %v1211 = vunpack.c.l.bf16 %v1195
    %v1212 = vunpack.c.l.bf16 %v1196
    %v1213 = vunpack.c.l.bf16 %v1197
    %v1214 = vunpack.c.l.bf16 %v1198
    %v1215 = vunpack.c.l.bf16 %v1199
    %v1216 = vunpack.c.l.bf16 %v1200
    %v1217 = vunpack.c.l.bf16 %v1201
    %v1218 = vunpack.c.l.bf16 %v1202
    %1219 = vmatprep.subr.mxu0 0.0
    %1220 = vmatpush1.msra.mxu0 %v1203
    %1221 = vmatprep.subr.mxu0 0.0
    %1222 = vmatpush1.msra.mxu0 %v1204
    %1223 = vmatprep.subr.mxu0 0.0
    %1224 = vmatpush1.msra.mxu0 %v1205
    %1225 = vmatprep.subr.mxu0 0.0
    %1226 = vmatpush1.msra.mxu0 %v1206
    %1227 = vmatprep.subr.mxu0 0.0
    %1228 = vmatpush1.msra.mxu0 %v1207
    %1229 = vmatprep.subr.mxu0 0.0
    %1230 = vmatpush1.msra.mxu0 %v1208
    %1231 = vmatprep.subr.mxu0 0.0
    %1232 = vmatpush1.msra.mxu0 %v1209
    %1233 = vmatprep.subr.mxu0 0.0
    %1234 = vmatpush1.msra.mxu0 %v1210
    %1235 = vmatprep.subr.mxu0 0.0
    %1236 = vmatpush1.msra.mxu0 %v1211
    %1237 = vmatprep.subr.mxu0 0.0
    %1238 = vmatpush1.msra.mxu0 %v1212
    %1239 = vmatprep.subr.mxu0 0.0
    %1240 = vmatpush1.msra.mxu0 %v1213
    %1241 = vmatprep.subr.mxu0 0.0
    %1242 = vmatpush1.msra.mxu0 %v1214
    %1243 = vmatprep.subr.mxu0 0.0
    %1244 = vmatpush1.msra.mxu0 %v1215
    %1245 = vmatprep.subr.mxu0 0.0
    %1246 = vmatpush1.msra.mxu0 %v1216
    %1247 = vmatprep.subr.mxu0 0.0
    %1248 = vmatpush1.msra.mxu0 %v1217
    %1249 = vmatprep.subr.mxu0 0.0
    %1250 = vmatpush1.msra.mxu0 %v1218
    %1251 = vmatprep.subr.mxu0 0.0
    %1252 = vmatpush1.msra.mxu0 0.0
    %1253 = vmatprep.subr.mxu0 0.0
    %1254 = vmatpush1.msra.mxu0 0.0
    %1255 = vmatprep.subr.mxu0 0.0
    %1256 = vmatpush1.msra.mxu0 0.0
    %1257 = vmatprep.subr.mxu0 0.0
    %1258 = vmatpush1.msra.mxu0 0.0
    %1259 = vmatprep.subr.mxu0 0.0
    %1260 = vmatpush1.msra.mxu0 0.0
    %1261 = vmatprep.subr.mxu0 0.0
    %1262 = vmatpush1.msra.mxu0 0.0
    %1263 = vmatprep.subr.mxu0 0.0
    %1264 = vmatpush1.msra.mxu0 0.0
    %1265 = vmatprep.subr.mxu0 0.0
    %1266 = vmatpush1.msra.mxu0 0.0
    %1267 = vmatprep.subr.mxu0 0.0
    %1268 = vmatpush1.msra.mxu0 0.0
    %1269 = vmatprep.subr.mxu0 0.0
    %1270 = vmatpush1.msra.mxu0 0.0
    %1271 = vmatprep.subr.mxu0 0.0
    %1272 = vmatpush1.msra.mxu0 0.0
    %1273 = vmatprep.subr.mxu0 0.0
    %1274 = vmatpush1.msra.mxu0 0.0
    %1275 = vmatprep.subr.mxu0 0.0
    %1276 = vmatpush1.msra.mxu0 0.0
    %1277 = vmatprep.subr.mxu0 0.0
    %1278 = vmatpush1.msra.mxu0 0.0
    %1279 = vmatprep.subr.mxu0 0.0
    %1280 = vmatpush1.msra.mxu0 0.0
    %1281 = vmatprep.subr.mxu0 0.0
    %1282 = vmatpush1.msra.mxu0 0.0
    %1283 = vmatprep.mubr.f32.mxu0 0.0
    %1284 = vmatmul.mubr.f32.gmra.mrb[0].mxu0 %v227
    %v1285 = vpop.f32.mrb[0].mxu0
    %v1286 = vadd.f32 0.0, %v1285
    %v1287 = vpop.f32.mrb[0].mxu0
    %1288 = vdwg.mxu0
    %s1289 = scalar_lea.vmem [#allocation2], 640
    %v1290 = vld [vmem:[%s1289] sm:$0xf]
    %v1291 = vld [vmem:[%s1289 + $0x4] sm:$0xf]
    %v1292 = vld [vmem:[%s1289 + $0x8] sm:$0xf]
    %v1293 = vld [vmem:[%s1289 + $0xc] sm:$0xf]
    %v1294 = vld [vmem:[%s1289 + $0x10] sm:$0xf]
    %v1295 = vld [vmem:[%s1289 + $0x14] sm:$0xf]
    %v1296 = vld [vmem:[%s1289 + $0x18] sm:$0xf]
    %v1297 = vld [vmem:[%s1289 + $0x1c] sm:$0xf]
    %v1298 = vld [vmem:[%s1289 + $0x20] sm:$0xf]
    %v1299 = vld [vmem:[%s1289 + $0x24] sm:$0xf]
    %v1300 = vld [vmem:[%s1289 + $0x28] sm:$0xf]
    %v1301 = vld [vmem:[%s1289 + $0x2c] sm:$0xf]
    %v1302 = vld [vmem:[%s1289 + $0x30] sm:$0xf]
    %v1303 = vld [vmem:[%s1289 + $0x34] sm:$0xf]
    %v1304 = vld [vmem:[%s1289 + $0x38] sm:$0xf]
    %v1305 = vld [vmem:[%s1289 + $0x3c] sm:$0xf]
    %v1306 = vunpack.c.l.bf16 %v1290
    %v1307 = vunpack.c.l.bf16 %v1291
    %v1308 = vunpack.c.l.bf16 %v1292
    %v1309 = vunpack.c.l.bf16 %v1293
    %v1310 = vunpack.c.l.bf16 %v1294
    %v1311 = vunpack.c.l.bf16 %v1295
    %v1312 = vunpack.c.l.bf16 %v1296
    %v1313 = vunpack.c.l.bf16 %v1297
    %v1314 = vunpack.c.l.bf16 %v1298
    %v1315 = vunpack.c.l.bf16 %v1299
    %v1316 = vunpack.c.l.bf16 %v1300
    %v1317 = vunpack.c.l.bf16 %v1301
    %v1318 = vunpack.c.l.bf16 %v1302
    %v1319 = vunpack.c.l.bf16 %v1303
    %v1320 = vunpack.c.l.bf16 %v1304
    %v1321 = vunpack.c.l.bf16 %v1305
    %1322 = vmatprep.subr.mxu0 0.0
    %1323 = vmatpush1.msra.mxu0 %v1306
    %1324 = vmatprep.subr.mxu0 0.0
    %1325 = vmatpush1.msra.mxu0 %v1307
    %1326 = vmatprep.subr.mxu0 0.0
    %1327 = vmatpush1.msra.mxu0 %v1308
    %1328 = vmatprep.subr.mxu0 0.0
    %1329 = vmatpush1.msra.mxu0 %v1309
    %1330 = vmatprep.subr.mxu0 0.0
    %1331 = vmatpush1.msra.mxu0 %v1310
    %1332 = vmatprep.subr.mxu0 0.0
    %1333 = vmatpush1.msra.mxu0 %v1311
    %1334 = vmatprep.subr.mxu0 0.0
    %1335 = vmatpush1.msra.mxu0 %v1312
    %1336 = vmatprep.subr.mxu0 0.0
    %1337 = vmatpush1.msra.mxu0 %v1313
    %1338 = vmatprep.subr.mxu0 0.0
    %1339 = vmatpush1.msra.mxu0 %v1314
    %1340 = vmatprep.subr.mxu0 0.0
    %1341 = vmatpush1.msra.mxu0 %v1315
    %1342 = vmatprep.subr.mxu0 0.0
    %1343 = vmatpush1.msra.mxu0 %v1316
    %1344 = vmatprep.subr.mxu0 0.0
    %1345 = vmatpush1.msra.mxu0 %v1317
    %1346 = vmatprep.subr.mxu0 0.0
    %1347 = vmatpush1.msra.mxu0 %v1318
    %1348 = vmatprep.subr.mxu0 0.0
    %1349 = vmatpush1.msra.mxu0 %v1319
    %1350 = vmatprep.subr.mxu0 0.0
    %1351 = vmatpush1.msra.mxu0 %v1320
    %1352 = vmatprep.subr.mxu0 0.0
    %1353 = vmatpush1.msra.mxu0 %v1321
    %1354 = vmatprep.subr.mxu0 0.0
    %1355 = vmatpush1.msra.mxu0 0.0
    %1356 = vmatprep.subr.mxu0 0.0
    %1357 = vmatpush1.msra.mxu0 0.0
    %1358 = vmatprep.subr.mxu0 0.0
    %1359 = vmatpush1.msra.mxu0 0.0
    %1360 = vmatprep.subr.mxu0 0.0
    %1361 = vmatpush1.msra.mxu0 0.0
    %1362 = vmatprep.subr.mxu0 0.0
    %1363 = vmatpush1.msra.mxu0 0.0
    %1364 = vmatprep.subr.mxu0 0.0
    %1365 = vmatpush1.msra.mxu0 0.0
    %1366 = vmatprep.subr.mxu0 0.0
    %1367 = vmatpush1.msra.mxu0 0.0
    %1368 = vmatprep.subr.mxu0 0.0
    %1369 = vmatpush1.msra.mxu0 0.0
    %1370 = vmatprep.subr.mxu0 0.0
    %1371 = vmatpush1.msra.mxu0 0.0
    %1372 = vmatprep.subr.mxu0 0.0
    %1373 = vmatpush1.msra.mxu0 0.0
    %1374 = vmatprep.subr.mxu0 0.0
    %1375 = vmatpush1.msra.mxu0 0.0
    %1376 = vmatprep.subr.mxu0 0.0
    %1377 = vmatpush1.msra.mxu0 0.0
    %1378 = vmatprep.subr.mxu0 0.0
    %1379 = vmatpush1.msra.mxu0 0.0
    %1380 = vmatprep.subr.mxu0 0.0
    %1381 = vmatpush1.msra.mxu0 0.0
    %1382 = vmatprep.subr.mxu0 0.0
    %1383 = vmatpush1.msra.mxu0 0.0
    %1384 = vmatprep.subr.mxu0 0.0
    %1385 = vmatpush1.msra.mxu0 0.0
    %1386 = vmatprep.mubr.f32.mxu0 0.0
    %1387 = vmatmul.mubr.f32.gmra.mrb[0].mxu0 %v232
    %v1388 = vpop.f32.mrb[0].mxu0
    %v1389 = vadd.f32 0.0, %v1388
    %v1390 = vpop.f32.mrb[0].mxu0
    %1391 = vdwg.mxu0
    %s1392 = scalar_lea.vmem [#allocation2], 704
    %v1393 = vld [vmem:[%s1392] sm:$0xf]
    %v1394 = vld [vmem:[%s1392 + $0x4] sm:$0xf]
    %v1395 = vld [vmem:[%s1392 + $0x8] sm:$0xf]
    %v1396 = vld [vmem:[%s1392 + $0xc] sm:$0xf]
    %v1397 = vld [vmem:[%s1392 + $0x10] sm:$0xf]
    %v1398 = vld [vmem:[%s1392 + $0x14] sm:$0xf]
    %v1399 = vld [vmem:[%s1392 + $0x18] sm:$0xf]
    %v1400 = vld [vmem:[%s1392 + $0x1c] sm:$0xf]
    %v1401 = vld [vmem:[%s1392 + $0x20] sm:$0xf]
    %v1402 = vld [vmem:[%s1392 + $0x24] sm:$0xf]
    %v1403 = vld [vmem:[%s1392 + $0x28] sm:$0xf]
    %v1404 = vld [vmem:[%s1392 + $0x2c] sm:$0xf]
    %v1405 = vld [vmem:[%s1392 + $0x30] sm:$0xf]
    %v1406 = vld [vmem:[%s1392 + $0x34] sm:$0xf]
    %v1407 = vld [vmem:[%s1392 + $0x38] sm:$0xf]
    %v1408 = vld [vmem:[%s1392 + $0x3c] sm:$0xf]
    %v1409 = vunpack.c.l.bf16 %v1393
    %v1410 = vunpack.c.l.bf16 %v1394
    %v1411 = vunpack.c.l.bf16 %v1395
    %v1412 = vunpack.c.l.bf16 %v1396
    %v1413 = vunpack.c.l.bf16 %v1397
    %v1414 = vunpack.c.l.bf16 %v1398
    %v1415 = vunpack.c.l.bf16 %v1399
    %v1416 = vunpack.c.l.bf16 %v1400
    %v1417 = vunpack.c.l.bf16 %v1401
    %v1418 = vunpack.c.l.bf16 %v1402
    %v1419 = vunpack.c.l.bf16 %v1403
    %v1420 = vunpack.c.l.bf16 %v1404
    %v1421 = vunpack.c.l.bf16 %v1405
    %v1422 = vunpack.c.l.bf16 %v1406
    %v1423 = vunpack.c.l.bf16 %v1407
    %v1424 = vunpack.c.l.bf16 %v1408
    %1425 = vmatprep.subr.mxu0 0.0
    %1426 = vmatpush1.msra.mxu0 %v1409
    %1427 = vmatprep.subr.mxu0 0.0
    %1428 = vmatpush1.msra.mxu0 %v1410
    %1429 = vmatprep.subr.mxu0 0.0
    %1430 = vmatpush1.msra.mxu0 %v1411
    %1431 = vmatprep.subr.mxu0 0.0
    %1432 = vmatpush1.msra.mxu0 %v1412
    %1433 = vmatprep.subr.mxu0 0.0
    %1434 = vmatpush1.msra.mxu0 %v1413
    %1435 = vmatprep.subr.mxu0 0.0
    %1436 = vmatpush1.msra.mxu0 %v1414
    %1437 = vmatprep.subr.mxu0 0.0
    %1438 = vmatpush1.msra.mxu0 %v1415
    %1439 = vmatprep.subr.mxu0 0.0
    %1440 = vmatpush1.msra.mxu0 %v1416
    %1441 = vmatprep.subr.mxu0 0.0
    %1442 = vmatpush1.msra.mxu0 %v1417
    %1443 = vmatprep.subr.mxu0 0.0
    %1444 = vmatpush1.msra.mxu0 %v1418
    %1445 = vmatprep.subr.mxu0 0.0
    %1446 = vmatpush1.msra.mxu0 %v1419
    %1447 = vmatprep.subr.mxu0 0.0
    %1448 = vmatpush1.msra.mxu0 %v1420
    %1449 = vmatprep.subr.mxu0 0.0
    %1450 = vmatpush1.msra.mxu0 %v1421
    %1451 = vmatprep.subr.mxu0 0.0
    %1452 = vmatpush1.msra.mxu0 %v1422
    %1453 = vmatprep.subr.mxu0 0.0
    %1454 = vmatpush1.msra.mxu0 %v1423
    %1455 = vmatprep.subr.mxu0 0.0
    %1456 = vmatpush1.msra.mxu0 %v1424
    %1457 = vmatprep.subr.mxu0 0.0
    %1458 = vmatpush1.msra.mxu0 0.0
    %1459 = vmatprep.subr.mxu0 0.0
    %1460 = vmatpush1.msra.mxu0 0.0
    %1461 = vmatprep.subr.mxu0 0.0
    %1462 = vmatpush1.msra.mxu0 0.0
    %1463 = vmatprep.subr.mxu0 0.0
    %1464 = vmatpush1.msra.mxu0 0.0
    %1465 = vmatprep.subr.mxu0 0.0
    %1466 = vmatpush1.msra.mxu0 0.0
    %1467 = vmatprep.subr.mxu0 0.0
    %1468 = vmatpush1.msra.mxu0 0.0
    %1469 = vmatprep.subr.mxu0 0.0
    %1470 = vmatpush1.msra.mxu0 0.0
    %1471 = vmatprep.subr.mxu0 0.0
    %1472 = vmatpush1.msra.mxu0 0.0
    %1473 = vmatprep.subr.mxu0 0.0
    %1474 = vmatpush1.msra.mxu0 0.0
    %1475 = vmatprep.subr.mxu0 0.0
    %1476 = vmatpush1.msra.mxu0 0.0
    %1477 = vmatprep.subr.mxu0 0.0
    %1478 = vmatpush1.msra.mxu0 0.0
    %1479 = vmatprep.subr.mxu0 0.0
    %1480 = vmatpush1.msra.mxu0 0.0
    %1481 = vmatprep.subr.mxu0 0.0
    %1482 = vmatpush1.msra.mxu0 0.0
    %1483 = vmatprep.subr.mxu0 0.0
    %1484 = vmatpush1.msra.mxu0 0.0
    %1485 = vmatprep.subr.mxu0 0.0
    %1486 = vmatpush1.msra.mxu0 0.0
    %1487 = vmatprep.subr.mxu0 0.0
    %1488 = vmatpush1.msra.mxu0 0.0
    %1489 = vmatprep.mubr.f32.mxu0 0.0
    %1490 = vmatmul.mubr.f32.gmra.mrb[0].mxu0 %v237
    %v1491 = vpop.f32.mrb[0].mxu0
    %v1492 = vadd.f32 0.0, %v1491
    %v1493 = vpop.f32.mrb[0].mxu0
    %1494 = vdwg.mxu0
    %s1495 = scalar_lea.vmem [#allocation2], 768
    %v1496 = vld [vmem:[%s1495] sm:$0xf]
    %v1497 = vld [vmem:[%s1495 + $0x4] sm:$0xf]
    %v1498 = vld [vmem:[%s1495 + $0x8] sm:$0xf]
    %v1499 = vld [vmem:[%s1495 + $0xc] sm:$0xf]
    %v1500 = vld [vmem:[%s1495 + $0x10] sm:$0xf]
    %v1501 = vld [vmem:[%s1495 + $0x14] sm:$0xf]
    %v1502 = vld [vmem:[%s1495 + $0x18] sm:$0xf]
    %v1503 = vld [vmem:[%s1495 + $0x1c] sm:$0xf]
    %v1504 = vld [vmem:[%s1495 + $0x20] sm:$0xf]
    %v1505 = vld [vmem:[%s1495 + $0x24] sm:$0xf]
    %v1506 = vld [vmem:[%s1495 + $0x28] sm:$0xf]
    %v1507 = vld [vmem:[%s1495 + $0x2c] sm:$0xf]
    %v1508 = vld [vmem:[%s1495 + $0x30] sm:$0xf]
    %v1509 = vld [vmem:[%s1495 + $0x34] sm:$0xf]
    %v1510 = vld [vmem:[%s1495 + $0x38] sm:$0xf]
    %v1511 = vld [vmem:[%s1495 + $0x3c] sm:$0xf]
    %v1512 = vunpack.c.l.bf16 %v1496
    %v1513 = vunpack.c.l.bf16 %v1497
    %v1514 = vunpack.c.l.bf16 %v1498
    %v1515 = vunpack.c.l.bf16 %v1499
    %v1516 = vunpack.c.l.bf16 %v1500
    %v1517 = vunpack.c.l.bf16 %v1501
    %v1518 = vunpack.c.l.bf16 %v1502
    %v1519 = vunpack.c.l.bf16 %v1503
    %v1520 = vunpack.c.l.bf16 %v1504
    %v1521 = vunpack.c.l.bf16 %v1505
    %v1522 = vunpack.c.l.bf16 %v1506
    %v1523 = vunpack.c.l.bf16 %v1507
    %v1524 = vunpack.c.l.bf16 %v1508
    %v1525 = vunpack.c.l.bf16 %v1509
    %v1526 = vunpack.c.l.bf16 %v1510
    %v1527 = vunpack.c.l.bf16 %v1511
    %1528 = vmatprep.subr.mxu0 0.0
    %1529 = vmatpush1.msra.mxu0 %v1512
    %1530 = vmatprep.subr.mxu0 0.0
    %1531 = vmatpush1.msra.mxu0 %v1513
    %1532 = vmatprep.subr.mxu0 0.0
    %1533 = vmatpush1.msra.mxu0 %v1514
    %1534 = vmatprep.subr.mxu0 0.0
    %1535 = vmatpush1.msra.mxu0 %v1515
    %1536 = vmatprep.subr.mxu0 0.0
    %1537 = vmatpush1.msra.mxu0 %v1516
    %1538 = vmatprep.subr.mxu0 0.0
    %1539 = vmatpush1.msra.mxu0 %v1517
    %1540 = vmatprep.subr.mxu0 0.0
    %1541 = vmatpush1.msra.mxu0 %v1518
    %1542 = vmatprep.subr.mxu0 0.0
    %1543 = vmatpush1.msra.mxu0 %v1519
    %1544 = vmatprep.subr.mxu0 0.0
    %1545 = vmatpush1.msra.mxu0 %v1520
    %1546 = vmatprep.subr.mxu0 0.0
    %1547 = vmatpush1.msra.mxu0 %v1521
    %1548 = vmatprep.subr.mxu0 0.0
    %1549 = vmatpush1.msra.mxu0 %v1522
    %1550 = vmatprep.subr.mxu0 0.0
    %1551 = vmatpush1.msra.mxu0 %v1523
    %1552 = vmatprep.subr.mxu0 0.0
    %1553 = vmatpush1.msra.mxu0 %v1524
    %1554 = vmatprep.subr.mxu0 0.0
    %1555 = vmatpush1.msra.mxu0 %v1525
    %1556 = vmatprep.subr.mxu0 0.0
    %1557 = vmatpush1.msra.mxu0 %v1526
    %1558 = vmatprep.subr.mxu0 0.0
    %1559 = vmatpush1.msra.mxu0 %v1527
    %1560 = vmatprep.subr.mxu0 0.0
    %1561 = vmatpush1.msra.mxu0 0.0
    %1562 = vmatprep.subr.mxu0 0.0
    %1563 = vmatpush1.msra.mxu0 0.0
    %1564 = vmatprep.subr.mxu0 0.0
    %1565 = vmatpush1.msra.mxu0 0.0
    %1566 = vmatprep.subr.mxu0 0.0
    %1567 = vmatpush1.msra.mxu0 0.0
    %1568 = vmatprep.subr.mxu0 0.0
    %1569 = vmatpush1.msra.mxu0 0.0
    %1570 = vmatprep.subr.mxu0 0.0
    %1571 = vmatpush1.msra.mxu0 0.0
    %1572 = vmatprep.subr.mxu0 0.0
    %1573 = vmatpush1.msra.mxu0 0.0
    %1574 = vmatprep.subr.mxu0 0.0
    %1575 = vmatpush1.msra.mxu0 0.0
    %1576 = vmatprep.subr.mxu0 0.0
    %1577 = vmatpush1.msra.mxu0 0.0
    %1578 = vmatprep.subr.mxu0 0.0
    %1579 = vmatpush1.msra.mxu0 0.0
    %1580 = vmatprep.subr.mxu0 0.0
    %1581 = vmatpush1.msra.mxu0 0.0
    %1582 = vmatprep.subr.mxu0 0.0
    %1583 = vmatpush1.msra.mxu0 0.0
    %1584 = vmatprep.subr.mxu0 0.0
    %1585 = vmatpush1.msra.mxu0 0.0
    %1586 = vmatprep.subr.mxu0 0.0
    %1587 = vmatpush1.msra.mxu0 0.0
    %1588 = vmatprep.subr.mxu0 0.0
    %1589 = vmatpush1.msra.mxu0 0.0
    %1590 = vmatprep.subr.mxu0 0.0
    %1591 = vmatpush1.msra.mxu0 0.0
    %1592 = vmatprep.mubr.f32.mxu0 0.0
    %1593 = vmatmul.mubr.f32.gmra.mrb[0].mxu0 %v242
    %v1594 = vpop.f32.mrb[0].mxu0
    %v1595 = vadd.f32 0.0, %v1594
    %v1596 = vpop.f32.mrb[0].mxu0
    %1597 = vdwg.mxu0
    %s1598 = scalar_lea.vmem [#allocation2], 832
    %v1599 = vld [vmem:[%s1598] sm:$0xf]
    %v1600 = vld [vmem:[%s1598 + $0x4] sm:$0xf]
    %v1601 = vld [vmem:[%s1598 + $0x8] sm:$0xf]
    %v1602 = vld [vmem:[%s1598 + $0xc] sm:$0xf]
    %v1603 = vld [vmem:[%s1598 + $0x10] sm:$0xf]
    %v1604 = vld [vmem:[%s1598 + $0x14] sm:$0xf]
    %v1605 = vld [vmem:[%s1598 + $0x18] sm:$0xf]
    %v1606 = vld [vmem:[%s1598 + $0x1c] sm:$0xf]
    %v1607 = vld [vmem:[%s1598 + $0x20] sm:$0xf]
    %v1608 = vld [vmem:[%s1598 + $0x24] sm:$0xf]
    %v1609 = vld [vmem:[%s1598 + $0x28] sm:$0xf]
    %v1610 = vld [vmem:[%s1598 + $0x2c] sm:$0xf]
    %v1611 = vld [vmem:[%s1598 + $0x30] sm:$0xf]
    %v1612 = vld [vmem:[%s1598 + $0x34] sm:$0xf]
    %v1613 = vld [vmem:[%s1598 + $0x38] sm:$0xf]
    %v1614 = vld [vmem:[%s1598 + $0x3c] sm:$0xf]
    %v1615 = vunpack.c.l.bf16 %v1599
    %v1616 = vunpack.c.l.bf16 %v1600
    %v1617 = vunpack.c.l.bf16 %v1601
    %v1618 = vunpack.c.l.bf16 %v1602
    %v1619 = vunpack.c.l.bf16 %v1603
    %v1620 = vunpack.c.l.bf16 %v1604
    %v1621 = vunpack.c.l.bf16 %v1605
    %v1622 = vunpack.c.l.bf16 %v1606
    %v1623 = vunpack.c.l.bf16 %v1607
    %v1624 = vunpack.c.l.bf16 %v1608
    %v1625 = vunpack.c.l.bf16 %v1609
    %v1626 = vunpack.c.l.bf16 %v1610
    %v1627 = vunpack.c.l.bf16 %v1611
    %v1628 = vunpack.c.l.bf16 %v1612
    %v1629 = vunpack.c.l.bf16 %v1613
    %v1630 = vunpack.c.l.bf16 %v1614
    %1631 = vmatprep.subr.mxu0 0.0
    %1632 = vmatpush1.msra.mxu0 %v1615
    %1633 = vmatprep.subr.mxu0 0.0
    %1634 = vmatpush1.msra.mxu0 %v1616
    %1635 = vmatprep.subr.mxu0 0.0
    %1636 = vmatpush1.msra.mxu0 %v1617
    %1637 = vmatprep.subr.mxu0 0.0
    %1638 = vmatpush1.msra.mxu0 %v1618
    %1639 = vmatprep.subr.mxu0 0.0
    %1640 = vmatpush1.msra.mxu0 %v1619
    %1641 = vmatprep.subr.mxu0 0.0
    %1642 = vmatpush1.msra.mxu0 %v1620
    %1643 = vmatprep.subr.mxu0 0.0
    %1644 = vmatpush1.msra.mxu0 %v1621
    %1645 = vmatprep.subr.mxu0 0.0
    %1646 = vmatpush1.msra.mxu0 %v1622
    %1647 = vmatprep.subr.mxu0 0.0
    %1648 = vmatpush1.msra.mxu0 %v1623
    %1649 = vmatprep.subr.mxu0 0.0
    %1650 = vmatpush1.msra.mxu0 %v1624
    %1651 = vmatprep.subr.mxu0 0.0
    %1652 = vmatpush1.msra.mxu0 %v1625
    %1653 = vmatprep.subr.mxu0 0.0
    %1654 = vmatpush1.msra.mxu0 %v1626
    %1655 = vmatprep.subr.mxu0 0.0
    %1656 = vmatpush1.msra.mxu0 %v1627
    %1657 = vmatprep.subr.mxu0 0.0
    %1658 = vmatpush1.msra.mxu0 %v1628
    %1659 = vmatprep.subr.mxu0 0.0
    %1660 = vmatpush1.msra.mxu0 %v1629
    %1661 = vmatprep.subr.mxu0 0.0
    %1662 = vmatpush1.msra.mxu0 %v1630
    %1663 = vmatprep.subr.mxu0 0.0
    %1664 = vmatpush1.msra.mxu0 0.0
    %1665 = vmatprep.subr.mxu0 0.0
    %1666 = vmatpush1.msra.mxu0 0.0
    %1667 = vmatprep.subr.mxu0 0.0
    %1668 = vmatpush1.msra.mxu0 0.0
    %1669 = vmatprep.subr.mxu0 0.0
    %1670 = vmatpush1.msra.mxu0 0.0
    %1671 = vmatprep.subr.mxu0 0.0
    %1672 = vmatpush1.msra.mxu0 0.0
    %1673 = vmatprep.subr.mxu0 0.0
    %1674 = vmatpush1.msra.mxu0 0.0
    %1675 = vmatprep.subr.mxu0 0.0
    %1676 = vmatpush1.msra.mxu0 0.0
    %1677 = vmatprep.subr.mxu0 0.0
    %1678 = vmatpush1.msra.mxu0 0.0
    %1679 = vmatprep.subr.mxu0 0.0
    %1680 = vmatpush1.msra.mxu0 0.0
    %1681 = vmatprep.subr.mxu0 0.0
    %1682 = vmatpush1.msra.mxu0 0.0
    %1683 = vmatprep.subr.mxu0 0.0
    %1684 = vmatpush1.msra.mxu0 0.0
    %1685 = vmatprep.subr.mxu0 0.0
    %1686 = vmatpush1.msra.mxu0 0.0
    %1687 = vmatprep.subr.mxu0 0.0
    %1688 = vmatpush1.msra.mxu0 0.0
    %1689 = vmatprep.subr.mxu0 0.0
    %1690 = vmatpush1.msra.mxu0 0.0
    %1691 = vmatprep.subr.mxu0 0.0
    %1692 = vmatpush1.msra.mxu0 0.0
    %1693 = vmatprep.subr.mxu0 0.0
    %1694 = vmatpush1.msra.mxu0 0.0
    %1695 = vmatprep.mubr.f32.mxu0 0.0
    %1696 = vmatmul.mubr.f32.gmra.mrb[0].mxu0 %v247
    %v1697 = vpop.f32.mrb[0].mxu0
    %v1698 = vadd.f32 0.0, %v1697
    %v1699 = vpop.f32.mrb[0].mxu0
    %1700 = vdwg.mxu0
    %s1701 = scalar_lea.vmem [#allocation2], 896
    %v1702 = vld [vmem:[%s1701] sm:$0xf]
    %v1703 = vld [vmem:[%s1701 + $0x4] sm:$0xf]
    %v1704 = vld [vmem:[%s1701 + $0x8] sm:$0xf]
    %v1705 = vld [vmem:[%s1701 + $0xc] sm:$0xf]
    %v1706 = vld [vmem:[%s1701 + $0x10] sm:$0xf]
    %v1707 = vld [vmem:[%s1701 + $0x14] sm:$0xf]
    %v1708 = vld [vmem:[%s1701 + $0x18] sm:$0xf]
    %v1709 = vld [vmem:[%s1701 + $0x1c] sm:$0xf]
    %v1710 = vld [vmem:[%s1701 + $0x20] sm:$0xf]
    %v1711 = vld [vmem:[%s1701 + $0x24] sm:$0xf]
    %v1712 = vld [vmem:[%s1701 + $0x28] sm:$0xf]
    %v1713 = vld [vmem:[%s1701 + $0x2c] sm:$0xf]
    %v1714 = vld [vmem:[%s1701 + $0x30] sm:$0xf]
    %v1715 = vld [vmem:[%s1701 + $0x34] sm:$0xf]
    %v1716 = vld [vmem:[%s1701 + $0x38] sm:$0xf]
    %v1717 = vld [vmem:[%s1701 + $0x3c] sm:$0xf]
    %v1718 = vunpack.c.l.bf16 %v1702
    %v1719 = vunpack.c.l.bf16 %v1703
    %v1720 = vunpack.c.l.bf16 %v1704
    %v1721 = vunpack.c.l.bf16 %v1705
    %v1722 = vunpack.c.l.bf16 %v1706
    %v1723 = vunpack.c.l.bf16 %v1707
    %v1724 = vunpack.c.l.bf16 %v1708
    %v1725 = vunpack.c.l.bf16 %v1709
    %v1726 = vunpack.c.l.bf16 %v1710
    %v1727 = vunpack.c.l.bf16 %v1711
    %v1728 = vunpack.c.l.bf16 %v1712
    %v1729 = vunpack.c.l.bf16 %v1713
    %v1730 = vunpack.c.l.bf16 %v1714
    %v1731 = vunpack.c.l.bf16 %v1715
    %v1732 = vunpack.c.l.bf16 %v1716
    %v1733 = vunpack.c.l.bf16 %v1717
    %1734 = vmatprep.subr.mxu0 0.0
    %1735 = vmatpush1.msra.mxu0 %v1718
    %1736 = vmatprep.subr.mxu0 0.0
    %1737 = vmatpush1.msra.mxu0 %v1719
    %1738 = vmatprep.subr.mxu0 0.0
    %1739 = vmatpush1.msra.mxu0 %v1720
    %1740 = vmatprep.subr.mxu0 0.0
    %1741 = vmatpush1.msra.mxu0 %v1721
    %1742 = vmatprep.subr.mxu0 0.0
    %1743 = vmatpush1.msra.mxu0 %v1722
    %1744 = vmatprep.subr.mxu0 0.0
    %1745 = vmatpush1.msra.mxu0 %v1723
    %1746 = vmatprep.subr.mxu0 0.0
    %1747 = vmatpush1.msra.mxu0 %v1724
    %1748 = vmatprep.subr.mxu0 0.0
    %1749 = vmatpush1.msra.mxu0 %v1725
    %1750 = vmatprep.subr.mxu0 0.0
    %1751 = vmatpush1.msra.mxu0 %v1726
    %1752 = vmatprep.subr.mxu0 0.0
    %1753 = vmatpush1.msra.mxu0 %v1727
    %1754 = vmatprep.subr.mxu0 0.0
    %1755 = vmatpush1.msra.mxu0 %v1728
    %1756 = vmatprep.subr.mxu0 0.0
    %1757 = vmatpush1.msra.mxu0 %v1729
    %1758 = vmatprep.subr.mxu0 0.0
    %1759 = vmatpush1.msra.mxu0 %v1730
    %1760 = vmatprep.subr.mxu0 0.0
    %1761 = vmatpush1.msra.mxu0 %v1731
    %1762 = vmatprep.subr.mxu0 0.0
    %1763 = vmatpush1.msra.mxu0 %v1732
    %1764 = vmatprep.subr.mxu0 0.0
    %1765 = vmatpush1.msra.mxu0 %v1733
    %1766 = vmatprep.subr.mxu0 0.0
    %1767 = vmatpush1.msra.mxu0 0.0
    %1768 = vmatprep.subr.mxu0 0.0
    %1769 = vmatpush1.msra.mxu0 0.0
    %1770 = vmatprep.subr.mxu0 0.0
    %1771 = vmatpush1.msra.mxu0 0.0
    %1772 = vmatprep.subr.mxu0 0.0
    %1773 = vmatpush1.msra.mxu0 0.0
    %1774 = vmatprep.subr.mxu0 0.0
    %1775 = vmatpush1.msra.mxu0 0.0
    %1776 = vmatprep.subr.mxu0 0.0
    %1777 = vmatpush1.msra.mxu0 0.0
    %1778 = vmatprep.subr.mxu0 0.0
    %1779 = vmatpush1.msra.mxu0 0.0
    %1780 = vmatprep.subr.mxu0 0.0
    %1781 = vmatpush1.msra.mxu0 0.0
    %1782 = vmatprep.subr.mxu0 0.0
    %1783 = vmatpush1.msra.mxu0 0.0
    %1784 = vmatprep.subr.mxu0 0.0
    %1785 = vmatpush1.msra.mxu0 0.0
    %1786 = vmatprep.subr.mxu0 0.0
    %1787 = vmatpush1.msra.mxu0 0.0
    %1788 = vmatprep.subr.mxu0 0.0
    %1789 = vmatpush1.msra.mxu0 0.0
    %1790 = vmatprep.subr.mxu0 0.0
    %1791 = vmatpush1.msra.mxu0 0.0
    %1792 = vmatprep.subr.mxu0 0.0
    %1793 = vmatpush1.msra.mxu0 0.0
    %1794 = vmatprep.subr.mxu0 0.0
    %1795 = vmatpush1.msra.mxu0 0.0
    %1796 = vmatprep.subr.mxu0 0.0
    %1797 = vmatpush1.msra.mxu0 0.0
    %1798 = vmatprep.mubr.f32.mxu0 0.0
    %1799 = vmatmul.mubr.f32.gmra.mrb[0].mxu0 %v252
    %v1800 = vpop.f32.mrb[0].mxu0
    %v1801 = vadd.f32 0.0, %v1800
    %v1802 = vpop.f32.mrb[0].mxu0
    %1803 = vdwg.mxu0
    %s1804 = scalar_lea.vmem [#allocation2], 960
    %v1805 = vld [vmem:[%s1804] sm:$0xf]
    %v1806 = vld [vmem:[%s1804 + $0x4] sm:$0xf]
    %v1807 = vld [vmem:[%s1804 + $0x8] sm:$0xf]
    %v1808 = vld [vmem:[%s1804 + $0xc] sm:$0xf]
    %v1809 = vld [vmem:[%s1804 + $0x10] sm:$0xf]
    %v1810 = vld [vmem:[%s1804 + $0x14] sm:$0xf]
    %v1811 = vld [vmem:[%s1804 + $0x18] sm:$0xf]
    %v1812 = vld [vmem:[%s1804 + $0x1c] sm:$0xf]
    %v1813 = vld [vmem:[%s1804 + $0x20] sm:$0xf]
    %v1814 = vld [vmem:[%s1804 + $0x24] sm:$0xf]
    %v1815 = vld [vmem:[%s1804 + $0x28] sm:$0xf]
    %v1816 = vld [vmem:[%s1804 + $0x2c] sm:$0xf]
    %v1817 = vld [vmem:[%s1804 + $0x30] sm:$0xf]
    %v1818 = vld [vmem:[%s1804 + $0x34] sm:$0xf]
    %v1819 = vld [vmem:[%s1804 + $0x38] sm:$0xf]
    %v1820 = vld [vmem:[%s1804 + $0x3c] sm:$0xf]
    %v1821 = vunpack.c.l.bf16 %v1805
    %v1822 = vunpack.c.l.bf16 %v1806
    %v1823 = vunpack.c.l.bf16 %v1807
    %v1824 = vunpack.c.l.bf16 %v1808
    %v1825 = vunpack.c.l.bf16 %v1809
    %v1826 = vunpack.c.l.bf16 %v1810
    %v1827 = vunpack.c.l.bf16 %v1811
    %v1828 = vunpack.c.l.bf16 %v1812
    %v1829 = vunpack.c.l.bf16 %v1813
    %v1830 = vunpack.c.l.bf16 %v1814
    %v1831 = vunpack.c.l.bf16 %v1815
    %v1832 = vunpack.c.l.bf16 %v1816
    %v1833 = vunpack.c.l.bf16 %v1817
    %v1834 = vunpack.c.l.bf16 %v1818
    %v1835 = vunpack.c.l.bf16 %v1819
    %v1836 = vunpack.c.l.bf16 %v1820
    %1837 = vmatprep.subr.mxu0 0.0
    %1838 = vmatpush1.msra.mxu0 %v1821
    %1839 = vmatprep.subr.mxu0 0.0
    %1840 = vmatpush1.msra.mxu0 %v1822
    %1841 = vmatprep.subr.mxu0 0.0
    %1842 = vmatpush1.msra.mxu0 %v1823
    %1843 = vmatprep.subr.mxu0 0.0
    %1844 = vmatpush1.msra.mxu0 %v1824
    %1845 = vmatprep.subr.mxu0 0.0
    %1846 = vmatpush1.msra.mxu0 %v1825
    %1847 = vmatprep.subr.mxu0 0.0
    %1848 = vmatpush1.msra.mxu0 %v1826
    %1849 = vmatprep.subr.mxu0 0.0
    %1850 = vmatpush1.msra.mxu0 %v1827
    %1851 = vmatprep.subr.mxu0 0.0
    %1852 = vmatpush1.msra.mxu0 %v1828
    %1853 = vmatprep.subr.mxu0 0.0
    %1854 = vmatpush1.msra.mxu0 %v1829
    %1855 = vmatprep.subr.mxu0 0.0
    %1856 = vmatpush1.msra.mxu0 %v1830
    %1857 = vmatprep.subr.mxu0 0.0
    %1858 = vmatpush1.msra.mxu0 %v1831
    %1859 = vmatprep.subr.mxu0 0.0
    %1860 = vmatpush1.msra.mxu0 %v1832
    %1861 = vmatprep.subr.mxu0 0.0
    %1862 = vmatpush1.msra.mxu0 %v1833
    %1863 = vmatprep.subr.mxu0 0.0
    %1864 = vmatpush1.msra.mxu0 %v1834
    %1865 = vmatprep.subr.mxu0 0.0
    %1866 = vmatpush1.msra.mxu0 %v1835
    %1867 = vmatprep.subr.mxu0 0.0
    %1868 = vmatpush1.msra.mxu0 %v1836
    %1869 = vmatprep.subr.mxu0 0.0
    %1870 = vmatpush1.msra.mxu0 0.0
    %1871 = vmatprep.subr.mxu0 0.0
    %1872 = vmatpush1.msra.mxu0 0.0
    %1873 = vmatprep.subr.mxu0 0.0
    %1874 = vmatpush1.msra.mxu0 0.0
    %1875 = vmatprep.subr.mxu0 0.0
    %1876 = vmatpush1.msra.mxu0 0.0
    %1877 = vmatprep.subr.mxu0 0.0
    %1878 = vmatpush1.msra.mxu0 0.0
    %1879 = vmatprep.subr.mxu0 0.0
    %1880 = vmatpush1.msra.mxu0 0.0
    %1881 = vmatprep.subr.mxu0 0.0
    %1882 = vmatpush1.msra.mxu0 0.0
    %1883 = vmatprep.subr.mxu0 0.0
    %1884 = vmatpush1.msra.mxu0 0.0
    %1885 = vmatprep.subr.mxu0 0.0
    %1886 = vmatpush1.msra.mxu0 0.0
    %1887 = vmatprep.subr.mxu0 0.0
    %1888 = vmatpush1.msra.mxu0 0.0
    %1889 = vmatprep.subr.mxu0 0.0
    %1890 = vmatpush1.msra.mxu0 0.0
    %1891 = vmatprep.subr.mxu0 0.0
    %1892 = vmatpush1.msra.mxu0 0.0
    %1893 = vmatprep.subr.mxu0 0.0
    %1894 = vmatpush1.msra.mxu0 0.0
    %1895 = vmatprep.subr.mxu0 0.0
    %1896 = vmatpush1.msra.mxu0 0.0
    %1897 = vmatprep.subr.mxu0 0.0
    %1898 = vmatpush1.msra.mxu0 0.0
    %1899 = vmatprep.subr.mxu0 0.0
    %1900 = vmatpush1.msra.mxu0 0.0
    %1901 = vmatprep.mubr.f32.mxu0 0.0
    %1902 = vmatmul.mubr.f32.gmra.mrb[0].mxu0 %v257
    %v1903 = vpop.f32.mrb[0].mxu0
    %v1904 = vadd.f32 0.0, %v1903
    %v1905 = vpop.f32.mrb[0].mxu0
    %1906 = vdwg.mxu0
    %1907 = vxpose.xlu0.b32.start [1/16] %v359, 128
    %1908 = vxpose.xlu0.b32.cont [2/16] %v462, 128
    %1909 = vxpose.xlu0.b32.cont [3/16] %v565, 128
    %1910 = vxpose.xlu0.b32.cont [4/16] %v668, 128
    %1911 = vxpose.xlu0.b32.cont [5/16] %v771, 128
    %1912 = vxpose.xlu0.b32.cont [6/16] %v874, 128
    %1913 = vxpose.xlu0.b32.cont [7/16] %v977, 128
    %1914 = vxpose.xlu0.b32.cont [8/16] %v1080, 128
    %1915 = vxpose.xlu0.b32.cont [9/16] %v1183, 128
    %1916 = vxpose.xlu0.b32.cont [10/16] %v1286, 128
    %1917 = vxpose.xlu0.b32.cont [11/16] %v1389, 128
    %1918 = vxpose.xlu0.b32.cont [12/16] %v1492, 128
    %1919 = vxpose.xlu0.b32.cont [13/16] %v1595, 128
    %1920 = vxpose.xlu0.b32.cont [14/16] %v1698, 128
    %1921 = vxpose.xlu0.b32.cont [15/16] %v1801, 128
    %1922 = vxpose.xlu0.b32.end [16/16] %v1904, 128
    %v1923 = vpop.trf.xlu0
    %v1924 = vpop.trf.xlu0
    %v1925 = vpop.trf.xlu0
    %v1926 = vpop.trf.xlu0
    %v1927 = vpop.trf.xlu0
    %v1928 = vpop.trf.xlu0
    %v1929 = vpop.trf.xlu0
    %v1930 = vpop.trf.xlu0
    %v1931 = vpop.trf.xlu0
    %v1932 = vpop.trf.xlu0
    %v1933 = vpop.trf.xlu0
    %v1934 = vpop.trf.xlu0
    %v1935 = vpop.trf.xlu0
    %v1936 = vpop.trf.xlu0
    %v1937 = vpop.trf.xlu0
    %v1938 = vpop.trf.xlu0
    %v1939 = vld [vmem:[%s3] sm:$0xff]
    %v1940 = vld [vmem:[%s3 + $0x8] sm:$0xff]
    %v1941 = vld [vmem:[%s3 + $0x10] sm:$0xff]
    %v1942 = vld [vmem:[%s3 + $0x18] sm:$0xff]
    %v1943 = vld [vmem:[%s3 + $0x20] sm:$0xff]
    %v1944 = vld [vmem:[%s3 + $0x28] sm:$0xff]
    %v1945 = vld [vmem:[%s3 + $0x30] sm:$0xff]
    %v1946 = vld [vmem:[%s3 + $0x38] sm:$0xff]
    %v1947 = vmul.f32 %v1923, %v1939
    %v1948 = vmul.f32 %v1924, %v1940
    %v1949 = vmul.f32 %v1925, %v1941
    %v1950 = vmul.f32 %v1926, %v1942
    %v1951 = vmul.f32 %v1927, %v1943
    %v1952 = vmul.f32 %v1928, %v1944
    %v1953 = vmul.f32 %v1929, %v1945
    %v1954 = vmul.f32 %v1930, %v1946
    %1955 = vst [vmem:[#allocation5] sm:$0xff] %v1947
    %1956 = vst [vmem:[#allocation5 + $0x8] sm:$0xff] %v1948
    %1957 = vst [vmem:[#allocation5 + $0x10] sm:$0xff] %v1949
    %1958 = vst [vmem:[#allocation5 + $0x18] sm:$0xff] %v1950
    %1959 = vst [vmem:[#allocation5 + $0x20] sm:$0xff] %v1951
    %1960 = vst [vmem:[#allocation5 + $0x28] sm:$0xff] %v1952
    %1961 = vst [vmem:[#allocation5 + $0x30] sm:$0xff] %v1953
    %1962 = vst [vmem:[#allocation5 + $0x38] sm:$0xff] %v1954
    // Predicated region
    $region22: #{tpu_custom_call.1} parent=1 // pred_check
      _
    $region23: #{tpu_custom_call.1} parent=1 // pred_check_branch
      %1964 = sbr.rel (0) target = $region25
    $region24: #{tpu_custom_call.1} parent=1 // pred_region
      %s1966 = ssub.s32 1024, 1024
      %1967 = vsyncadd [#allocation4], %s1966
      %s1968 = sshll.u32 [#allocation5], 4
      %s1969 = int_to_ptr.vmem [resolvable:$true] %s1968
      %1974 = dma.vmem_to_hbm [thread:$0]  %s1969, 1024, %s4, [#allocation4], 128, 128, 8
    $region25: #{tpu_custom_call.1} parent=1 // pred_fallthru
      _
    // Predicated region
    $region26: #{tpu_custom_call.1} parent=1 // pred_check
      _
    $region27: #{tpu_custom_call.1} parent=1 // pred_check_branch
      %1976 = sbr.rel (0) target = $region29
    $region28: #{tpu_custom_call.1} parent=1 // pred_region
      %1977 = dma.done [#allocation4], 1024
    $region29: #{tpu_custom_call.1} parent=1 // pred_fallthru
      _
    %1978 = vsyncpa [#allocation3], 1
    %1979 = vsyncpa [#allocation4], 1

</llo_original>
